<compile_context>
chip_gen: v5e
topology: v5e:2x2
jax: 0.10.0
libtpu: 0.0.40
codegen_flags: <defaults>
</compile_context>

<pallas_src>
import functools
import math

import jax
import jax.numpy as jnp
from jax.experimental import pallas as pl
from jax.experimental.pallas import tpu as pltpu

HI = jax.lax.Precision.HIGHEST

# Set to jnp.bfloat16 for peak MXU throughput on v5e/v6e/v7x (f32 accumulation is kept
# either way); f32 is used here so the numeric check against the f32 reference stays tight.
MATMUL_DTYPE = jnp.float32


# ----------------------------------------------------------------------------
# Small math helpers usable both inside kernels and in the pure-JAX reference.
# ----------------------------------------------------------------------------

def elu(x):
    return jnp.where(x > 0, x, jnp.exp(jnp.minimum(x, 0.0)) - 1.0)


def leaky_relu(x, slope=0.2):
    return jnp.where(x > 0, x, slope * x)


def _ln_elu(z, g, b, eps):
    mu = jnp.mean(z, axis=-1, keepdims=True)
    var = jnp.mean((z - mu) ** 2, axis=-1, keepdims=True)
    return elu((z - mu) * jax.lax.rsqrt(var + eps) * g + b)


def layer_norm(x, gamma, beta, eps=1e-5):
    mu = jnp.mean(x, axis=-1, keepdims=True)
    var = jnp.mean((x - mu) ** 2, axis=-1, keepdims=True)
    return (x - mu) * jax.lax.rsqrt(var + eps) * gamma + beta


def _mm(a, b):
    """In-kernel matmul: optional bf16 operands, f32 accumulation, highest precision."""
    return jnp.dot(a.astype(MATMUL_DTYPE), b.astype(MATMUL_DTYPE),
                   preferred_element_type=jnp.float32, precision=HI)


def build_pe(max_len, d_model):
    """Replicates PositionalEncoding._build_pe (returns (max_len, d_model) f32)."""
    pe = jnp.zeros((max_len, d_model), dtype=jnp.float32)
    position = jnp.arange(0, max_len, dtype=jnp.float32)[:, None]
    div_term = jnp.exp(jnp.arange(0, d_model, 2, dtype=jnp.float32)
                       * (-math.log(10000.0) / d_model))
    sin_part = jnp.sin(position * div_term)
    cos_part = jnp.cos(position * div_term)
    pe = pe.at[:, 0::2].set(sin_part)
    if d_model % 2 != 0:
        pe = pe.at[:, 1::2].set(cos_part[:, : d_model // 2])
    else:
        pe = pe.at[:, 1::2].set(cos_part)
    return pe


def _choose_tile(m, want, min_blocks=2):
    """Largest multiple-of-8 tile <= `want` that still yields >= min_blocks grid steps
    (so v7x's two TensorCores both get work); single-TC chips lose nothing."""
    m8 = max(8, ((m + 7) // 8) * 8)
    cap = max(8, (((m8 + min_blocks - 1) // min_blocks + 7) // 8) * 8)
    tile = max(8, min(want, cap))
    return (tile // 8) * 8


def _pad_rows(x, multiple):
    pad = (-x.shape[0]) % multiple
    if pad:
        x = jnp.pad(x, ((0, pad),) + ((0, 0),) * (x.ndim - 1))
    return x


# ----------------------------------------------------------------------------
# Kernel 1: fused input_proj + ELU + GAT W projection (both matmuls, one pass).
# ----------------------------------------------------------------------------

def _inproj_gatw_kernel(x_ref, win_ref, bin_ref, wgat_ref, xp_ref, h_ref):
    xp = elu(_mm(x_ref[...], win_ref[...]) + bin_ref[...])
    xp_ref[...] = xp.astype(xp_ref.dtype)
    h_ref[...] = _mm(xp, wgat_ref[...]).astype(h_ref.dtype)


def pallas_inproj_gatw(x, w_in, b_in, w_gat, tile_m=512):
    m, k = x.shape
    e = w_in.shape[1]
    tile = _choose_tile(m, tile_m)
    x_p = _pad_rows(x, tile)
    mp = x_p.shape[0]
    xp, h = pl.pallas_call(
        _inproj_gatw_kernel,
        out_shape=(jax.ShapeDtypeStruct((mp, e), jnp.float32),
                   jax.ShapeDtypeStruct((mp, e), jnp.float32)),
        grid_spec=pltpu.PrefetchScalarGridSpec(
            num_scalar_prefetch=0,
            grid=(mp // tile,),
            in_specs=[
                pl.BlockSpec((tile, k), lambda i: (i, 0)),
                pl.BlockSpec((k, e), lambda i: (0, 0)),
                pl.BlockSpec((1, e), lambda i: (0, 0)),
                pl.BlockSpec((e, e), lambda i: (0, 0)),
            ],
            out_specs=[pl.BlockSpec((tile, e), lambda i: (i, 0)),
                       pl.BlockSpec((tile, e), lambda i: (i, 0))],
        ),
        compiler_params=pltpu.CompilerParams(dimension_semantics=("parallel",)),
    )(x_p, w_in, b_in.reshape(1, e), w_gat)
    return xp[:m], h[:m]


# ----------------------------------------------------------------------------
# Kernel 2 (mega): per node-tile, fully fused tail of the network:
#   GAT epilogue (residual+LN+ELU, all T snapshots) -> +PE -> K/V proj (all T)
#   -> Q proj (last timestep only) -> last-query attention -> out_proj
#   -> residual+LN+ELU -> classifier (padded to 128 output lanes).
#
# The per-head q.k contraction over Dh is a matmul with a block-diagonal ones
# matrix, so scores stay lane-dense (every lane carries its head's score) and
# the softmax over the T axis is pure elementwise VPU work.
# ----------------------------------------------------------------------------

def _temporal_head_kernel(agg_ref, xp_ref, gg_ref, gb_ref, pe_ref,
                          wkvq_ref, bkvq_ref, bdiag_ref,
                          wout_ref, bout_ref, tg_ref, tb_ref,
                          wcls_ref, bcls_ref, o_ref, *, scale, eps):
    t, tile, e = agg_ref.shape
    xp = xp_ref[...]                                           # (tile, E)

    # 1. GAT epilogue for all T snapshots at once (residual is x_proj; res_fc=Identity).
    z = agg_ref[...] + xp[None, :, :]                          # (T, tile, E)
    snap = _ln_elu(z, gg_ref[...], gb_ref[...], eps)

    # 2. Positional encoding add (row t of the PE table for snapshot t).
    xpe = snap + pe_ref[...][:, None, :]                       # (T, tile, E)
    xpe2d = xpe.reshape(t * tile, e)
    b_all = bkvq_ref[...]                                      # (3, E): k, v, q biases

    # 3. K / V projections for every timestep; Q only for the last one (all the
    #    model consumes downstream).
    k = (_mm(xpe2d, wkvq_ref[0]) + b_all[0:1, :]).reshape(t, tile, e)
    v = (_mm(xpe2d, wkvq_ref[1]) + b_all[1:2, :]).reshape(t, tile, e)
    xpe_last = xpe[t - 1]                                      # (tile, E)
    q = _mm(xpe_last, wkvq_ref[2]) + b_all[2:3, :]             # (tile, E)

    # 4. Last-query attention, lane-dense.
    prod = (q[None, :, :] * k).reshape(t * tile, e)
    scores = _mm(prod, bdiag_ref[...]).reshape(t, tile, e) * scale
    m = jnp.max(scores, axis=0, keepdims=True)
    p = jnp.exp(scores - m)
    p = p / jnp.sum(p, axis=0, keepdims=True)
    attn = jnp.sum(p * v, axis=0)                              # (tile, E)

    # 5. out_proj + residual + LayerNorm + ELU.
    y = _mm(attn, wout_ref[...]) + bout_ref[...]
    final = _ln_elu(xpe_last + y, tg_ref[...], tb_ref[...], eps)

    # 6. Classifier; output padded to a full 128-lane slab (unmasked stores).
    logits = _mm(final, wcls_ref[...]) + bcls_ref[...]
    o_ref[...] = logits.astype(o_ref.dtype)


def pallas_temporal_head(agg, x_proj, pe_rows, params, num_classes,
                         tile_m=512, eps=1e-5):
    t, n, e = agg.shape
    heads = params["num_temporal_heads"]
    dh = e // heads
    scale = 1.0 / math.sqrt(dh)

    tile = _choose_tile(n, tile_m)
    np_ = ((n + tile - 1) // tile) * tile
    if np_ != n:
        agg = jnp.pad(agg, ((0, 0), (0, np_ - n), (0, 0)))
        x_proj = jnp.pad(x_proj, ((0, np_ - n), (0, 0)))

    # Split the fused qkv weight by its (head, [q|k|v], dh) column layout (matches
    # the PyTorch reshape(S, N, H, 3*dh).chunk(3, dim=-1) semantics).
    w4 = params["w_qkv"].reshape(e, heads, 3, dh)
    b4 = params["b_qkv"].reshape(heads, 3, dh)
    wkvq = jnp.stack([w4[:, :, 1, :].reshape(e, e),     # K
                      w4[:, :, 2, :].reshape(e, e),     # V
                      w4[:, :, 0, :].reshape(e, e)],    # Q
                     axis=0)                             # (3, E, E)
    bkvq = jnp.stack([b4[:, 1, :].reshape(e),
                      b4[:, 2, :].reshape(e),
                      b4[:, 0, :].reshape(e)], axis=0)   # (3, E)

    # Block-diagonal ones matrix: lane-dense per-head reduction over dh.
    lane = jnp.arange(e)
    bdiag = (lane[:, None] // dh == lane[None, :] // dh).astype(jnp.float32)

    c_pad = max(128, ((num_classes + 127) // 128) * 128)
    w_cls = jnp.zeros((e, c_pad), jnp.float32).at[:, :num_classes].set(params["w_cls"])
    b_cls = jnp.zeros((1, c_pad), jnp.float32).at[0, :num_classes].set(params["b_cls"])

    logits = pl.pallas_call(
        functools.partial(_temporal_head_kernel, scale=scale, eps=eps),
        out_shape=jax.ShapeDtypeStruct((np_, c_pad), jnp.float32),
        grid_spec=pltpu.PrefetchScalarGridSpec(
            num_scalar_prefetch=0,
            grid=(np_ // tile,),
            in_specs=[
                pl.BlockSpec((t, tile, e), lambda i: (0, i, 0)),   # agg
                pl.BlockSpec((tile, e), lambda i: (i, 0)),         # x_proj (residual)
                pl.BlockSpec((1, e), lambda i: (0, 0)),            # gat_gamma
                pl.BlockSpec((1, e), lambda i: (0, 0)),            # gat_beta
                pl.BlockSpec((t, e), lambda i: (0, 0)),            # PE rows
                pl.BlockSpec((3, e, e), lambda i: (0, 0, 0)),      # w_k / w_v / w_q
                pl.BlockSpec((3, e), lambda i: (0, 0)),            # b_k / b_v / b_q
                pl.BlockSpec((e, e), lambda i: (0, 0)),            # block-diag ones
                pl.BlockSpec((e, e), lambda i: (0, 0)),            # w_out
                pl.BlockSpec((1, e), lambda i: (0, 0)),            # b_out
                pl.BlockSpec((1, e), lambda i: (0, 0)),            # t_gamma
                pl.BlockSpec((1, e), lambda i: (0, 0)),            # t_beta
                pl.BlockSpec((e, c_pad), lambda i: (0, 0)),        # w_cls (padded)
                pl.BlockSpec((1, c_pad), lambda i: (0, 0)),        # b_cls (padded)
            ],
            out_specs=pl.BlockSpec((tile, c_pad), lambda i: (i, 0)),
        ),
        compiler_params=pltpu.CompilerParams(
            dimension_semantics=("parallel",),
            vmem_limit_bytes=48 * 1024 * 1024,
        ),
    )(agg, x_proj,
      params["gat_gamma"].reshape(1, e), params["gat_beta"].reshape(1, e),
      pe_rows,
      wkvq, bkvq, bdiag,
      params["w_out"], params["b_out"].reshape(1, e),
      params["t_gamma"].reshape(1, e), params["t_beta"].reshape(1, e),
      w_cls, b_cls)
    return logits[:n, :num_classes]


# ----------------------------------------------------------------------------
# Graph (GAT) aggregation: data-dependent gather / scatter-softmax / scatter-add
# stays in plain JAX, but batched across all T snapshots with offset segment ids.
# ----------------------------------------------------------------------------

def gat_edge_aggregate_batched(h, edge_indices, attn_a, heads):
    # TODO(synk): edge gather + scatter-softmax + scatter-add are data-dependent
    # indexing with no clean dense Pallas tiling; they stay in plain JAX.
    n, e = h.shape
    dh = e // heads
    h_heads = h.reshape(n, heads, dh)
    a_src, a_dst = attn_a[:dh], attn_a[dh:]
    s_src = jnp.einsum("nhd,d->nh", h_heads, a_src, precision=HI)
    s_dst = jnp.einsum("nhd,d->nh", h_heads, a_dst, precision=HI)

    t = len(edge_indices)
    edges = jnp.stack(edge_indices, axis=0)                    # (T, 2, Eg)
    eg = edges.shape[2]
    src = edges[:, 0, :].reshape(-1)
    dst = edges[:, 1, :].reshape(-1)
    seg = dst + jnp.repeat(jnp.arange(t, dtype=dst.dtype) * n, eg)

    scores = leaky_relu(s_src[src] + s_dst[dst], 0.2)          # (T*Eg, H)
    seg_max = jax.ops.segment_max(scores, seg, num_segments=t * n)
    ex = jnp.exp(scores - seg_max[seg])
    denom = jax.ops.segment_sum(ex, seg, num_segments=t * n)
    alpha = ex / denom[seg]
    messages = h_heads[src] * alpha[:, :, None]                 # (T*Eg, H, Dh)
    agg = jax.ops.segment_sum(messages, seg, num_segments=t * n)
    return agg.reshape(t, n, e)


# ----------------------------------------------------------------------------
# Full forward pass (Pallas path).
# ----------------------------------------------------------------------------

def full_dysat_forward_pallas(params, x_original, edge_indices, node_masks=None):
    e = params["hidden_dim"]
    t = len(edge_indices)
    # 1. input_proj + ELU and GAT W projection, fused & hoisted (dropout = identity).
    x_proj, h = pallas_inproj_gatw(x_original, params["w_in"], params["b_in"],
                                   params["w_gat"])
    # 2. structural attention aggregation, batched across all snapshots.
    agg = gat_edge_aggregate_batched(h, edge_indices, params["attn_a"],
                                     params["num_struct_heads"])
    # 3. everything else (GAT epilogue, PE, temporal attention, classifier) fused.
    pe = params["pe"]
    if t > pe.shape[0]:
        pe = build_pe(t + 10, e)
    pe_rows = pe[:t].astype(jnp.float32)
    return pallas_temporal_head(agg, x_proj, pe_rows, params,
                                num_classes=params["w_cls"].shape[1])


# ----------------------------------------------------------------------------
# Pure-JAX reference (faithful, per-snapshot, full SxS attention).
# ----------------------------------------------------------------------------

def gat_edge_aggregate_ref(h_heads, edge_index, attn_a):
    n, h, d = h_heads.shape
    a_src, a_dst = attn_a[:d], attn_a[d:]
    s_src = jnp.einsum("nhd,d->nh", h_heads, a_src, precision=HI)
    s_dst = jnp.einsum("nhd,d->nh", h_heads, a_dst, precision=HI)
    src, dst = edge_index[0], edge_index[1]
    scores = leaky_relu(s_src[src] + s_dst[dst], 0.2)
    seg_max = jax.ops.segment_max(scores, dst, num_segments=n)
    ex = jnp.exp(scores - seg_max[dst])
    denom = jax.ops.segment_sum(ex, dst, num_segments=n)
    alpha = ex / denom[dst]
    messages = h_heads[src] * alpha[:, :, None]
    agg = jax.ops.segment_sum(messages, dst, num_segments=n)
    return agg.reshape(n, h * d)


def gat_layer_ref(x, edge_index, params):
    n, e_dim = x.shape
    heads = params["num_struct_heads"]
    dh = e_dim // heads
    h = jnp.dot(x, params["w_gat"], precision=HI)
    agg = gat_edge_aggregate_ref(h.reshape(n, heads, dh), edge_index, params["attn_a"])
    z = agg + x
    return elu(layer_norm(z, params["gat_gamma"], params["gat_beta"]))


def full_dysat_forward_ref(params, x_original, edge_indices, node_masks=None):
    x_proj = elu(jnp.dot(x_original, params["w_in"], precision=HI) + params["b_in"])
    snaps = [gat_layer_ref(x_proj, ei, params) for ei in edge_indices]
    seq = jnp.stack(snaps, axis=0)
    s, n, e_dim = seq.shape
    seq_pe = seq + params["pe"][:s][:, None, :]
    heads = params["num_temporal_heads"]
    dh = e_dim // heads
    qkv = jnp.einsum("snd,de->sne", seq_pe, params["w_qkv"], precision=HI) + params["b_qkv"]
    qkv = qkv.reshape(s, n, heads, 3 * dh).transpose(1, 2, 0, 3)      # (N, H, S, 3Dh)
    q, k, v = jnp.split(qkv, 3, axis=-1)
    attn_w = jnp.einsum("nhqd,nhkd->nhqk", q, k, precision=HI) / math.sqrt(dh)
    attn_w = jax.nn.softmax(attn_w, axis=-1)
    attn_o = jnp.einsum("nhqk,nhkd->nhqd", attn_w, v, precision=HI)
    attn_o = attn_o.transpose(2, 0, 1, 3).reshape(s, n, e_dim)
    y = jnp.einsum("snd,de->sne", attn_o, params["w_out"], precision=HI) + params["b_out"]
    z = elu(layer_norm(seq_pe + y, params["t_gamma"], params["t_beta"]))
    final = z[-1]
    return jnp.dot(final, params["w_cls"], precision=HI) + params["b_cls"]


# ----------------------------------------------------------------------------
# Demo
# ----------------------------------------------------------------------------

if __name__ == "__main__":
    N = 256            # nodes: >=2 row-blocks per grid so v7x's two TensorCores get work
    IN_DIM = 32
    HIDDEN = 128       # lane-dense last dim (multiple of 128)
    NUM_CLASSES = 4
    STRUCT_HEADS = 4
    TEMPORAL_HEADS = 4
    T = 4              # number of graph snapshots (temporal sequence length)
    EDGES = 512

    key = jax.random.PRNGKey(0)
    keys = jax.random.split(key, 12)

    def xavier(k, shape):
        fan_in, fan_out = shape[0], shape[-1]
        lim = math.sqrt(6.0 / (fan_in + fan_out))
        return jax.random.uniform(k, shape, jnp.float32, -lim, lim)

    dh_struct = HIDDEN // STRUCT_HEADS
    params = {
        "hidden_dim": HIDDEN,
        "num_struct_heads": STRUCT_HEADS,
        "num_temporal_heads": TEMPORAL_HEADS,
        "w_in": xavier(keys[0], (IN_DIM, HIDDEN)),
        "b_in": jnp.zeros((HIDDEN,), jnp.float32),
        "w_gat": xavier(keys[1], (HIDDEN, HIDDEN)),
        "attn_a": jax.random.normal(keys[2], (2 * dh_struct,), jnp.float32) * 0.1,
        "gat_gamma": jnp.ones((HIDDEN,), jnp.float32),
        "gat_beta": jnp.zeros((HIDDEN,), jnp.float32),
        "w_qkv": xavier(keys[3], (HIDDEN, 3 * HIDDEN)),
        "b_qkv": jnp.zeros((3 * HIDDEN,), jnp.float32),
        "w_out": xavier(keys[4], (HIDDEN, HIDDEN)),
        "b_out": jnp.zeros((HIDDEN,), jnp.float32),
        "t_gamma": jnp.ones((HIDDEN,), jnp.float32),
        "t_beta": jnp.zeros((HIDDEN,), jnp.float32),
        "w_cls": xavier(keys[5], (HIDDEN, NUM_CLASSES)),
        "b_cls": jnp.zeros((NUM_CLASSES,), jnp.float32),
        "pe": build_pe(max(T + 1, 50), HIDDEN),
    }

    x_original = jax.random.normal(keys[6], (N, IN_DIM), jnp.float32)
    edge_keys = jax.random.split(keys[7], T)
    edge_indices = [jax.random.randint(ek, (2, EDGES), 0, N, dtype=jnp.int32)
                    for ek in edge_keys]
    node_masks = jnp.ones((T, N), jnp.bool_)   # accepted but unused (as in the module)

    logits = full_dysat_forward_pallas(params, x_original, edge_indices, node_masks)
    logits = jax.block_until_ready(logits)

    ref = full_dysat_forward_ref(params, x_original, edge_indices, node_masks)
    assert logits.shape == (N, NUM_CLASSES)
    assert bool(jnp.all(jnp.isfinite(logits)))
    assert jnp.allclose(logits, ref, rtol=3e-2, atol=3e-2), "mismatch vs reference"

    print("KERNEL_OK")
</pallas_src>

<mosaic_0001>
module attributes {stable_mosaic.version = 11 : i64} {
  func.func @_inproj_gatw_kernel(%arg0: i32, %arg1: memref<128x32xf32, #tpu.memory_space<vmem>>, %arg2: memref<32x128xf32, #tpu.memory_space<vmem>>, %arg3: memref<1x128xf32, #tpu.memory_space<vmem>>, %arg4: memref<128x128xf32, #tpu.memory_space<vmem>>, %arg5: memref<128x128xf32, #tpu.memory_space<vmem>>, %arg6: memref<128x128xf32, #tpu.memory_space<vmem>>) attributes {dimension_semantics = [#tpu.dimension_semantics<parallel>], iteration_bounds = array<i64: 2>, scalar_prefetch = 0 : i64, scratch_operands = 0 : i64, tpu.core_type = #tpu.core_type<tc>, window_params = [{transform_indices = @transform_0, window_bounds = array<i64: 128, 32>}, {pipeline_mode = #tpu.pipeline_mode<synchronous>, transform_indices = @transform_1, window_bounds = array<i64: 32, 128>}, {pipeline_mode = #tpu.pipeline_mode<synchronous>, transform_indices = @transform_2, window_bounds = array<i64: 1, 128>}, {pipeline_mode = #tpu.pipeline_mode<synchronous>, transform_indices = @transform_3, window_bounds = array<i64: 128, 128>}, {transform_indices = @transform_4, window_bounds = array<i64: 128, 128>}, {transform_indices = @transform_5, window_bounds = array<i64: 128, 128>}]} {
    %c0 = arith.constant 0 : index
    %c0_0 = arith.constant 0 : index
    %0 = vector.load %arg1[%c0, %c0_0] : memref<128x32xf32, #tpu.memory_space<vmem>>, vector<128x32xf32>
    %c0_1 = arith.constant 0 : index
    %c0_2 = arith.constant 0 : index
    %1 = vector.load %arg2[%c0_1, %c0_2] : memref<32x128xf32, #tpu.memory_space<vmem>>, vector<32x128xf32>
    %cst = arith.constant dense<0.000000e+00> : vector<128x128xf32>
    %2 = tpu.matmul %0, %1, %cst {dimension_numbers = #tpu.dot_dimension_numbers<[1], [0], [0], [1], [0, 0, 1, 1], [], []>, precision = #tpu.contract_precision<fp32>} : vector<128x32xf32>, vector<32x128xf32>, vector<128x128xf32> -> vector<128x128xf32>
    %c0_3 = arith.constant 0 : index
    %c0_4 = arith.constant 0 : index
    %3 = vector.load %arg3[%c0_3, %c0_4] : memref<1x128xf32, #tpu.memory_space<vmem>>, vector<1x128xf32>
    %4 = vector.broadcast %3 : vector<1x128xf32> to vector<128x128xf32>
    %5 = arith.addf %2, %4 : vector<128x128xf32>
    %cst_5 = arith.constant 0.000000e+00 : f32
    %6 = vector.broadcast %cst_5 : f32 to vector<128x128xf32>
    %7 = arith.cmpf ogt, %5, %6 : vector<128x128xf32>
    %cst_6 = arith.constant 0.000000e+00 : f32
    %8 = vector.broadcast %cst_6 : f32 to vector<128x128xf32>
    %9 = arith.minimumf %5, %8 : vector<128x128xf32>
    %10 = math.exp %9 : vector<128x128xf32>
    %cst_7 = arith.constant 1.000000e+00 : f32
    %11 = vector.broadcast %cst_7 : f32 to vector<128x128xf32>
    %12 = arith.subf %10, %11 : vector<128x128xf32>
    %13 = arith.select %7, %5, %12 : vector<128x128xi1>, vector<128x128xf32>
    %c0_8 = arith.constant 0 : index
    %c0_9 = arith.constant 0 : index
    %14 = vector.load %arg5[%c0_8, %c0_9] : memref<128x128xf32, #tpu.memory_space<vmem>>, vector<128x128xf32>
    tpu.vector_store %arg5[%c0_8, %c0_9], %13 {strides = array<i32>} : memref<128x128xf32, #tpu.memory_space<vmem>>, vector<128x128xf32>,
    %c0_10 = arith.constant 0 : index
    %c0_11 = arith.constant 0 : index
    %15 = vector.load %arg4[%c0_10, %c0_11] : memref<128x128xf32, #tpu.memory_space<vmem>>, vector<128x128xf32>
    %cst_12 = arith.constant dense<0.000000e+00> : vector<128x128xf32>
    %16 = tpu.matmul %13, %15, %cst_12 {dimension_numbers = #tpu.dot_dimension_numbers<[1], [0], [0], [1], [0, 0, 1, 1], [], []>, precision = #tpu.contract_precision<fp32>} : vector<128x128xf32>, vector<128x128xf32>, vector<128x128xf32> -> vector<128x128xf32>
    %c0_13 = arith.constant 0 : index
    %c0_14 = arith.constant 0 : index
    %17 = vector.load %arg6[%c0_13, %c0_14] : memref<128x128xf32, #tpu.memory_space<vmem>>, vector<128x128xf32>
    tpu.vector_store %arg6[%c0_13, %c0_14], %16 {strides = array<i32>} : memref<128x128xf32, #tpu.memory_space<vmem>>, vector<128x128xf32>,
    return
  }
  func.func @transform_0(%arg0: i32) -> (i32, i32) {
    %c0_i32 = arith.constant 0 : i32
    %c0_i32_0 = arith.constant 0 : i32
    return %arg0, %c0_i32 : i32, i32
  }
  func.func @transform_1(%arg0: i32) -> (i32, i32) {
    %c0_i32 = arith.constant 0 : i32
    %c0_i32_0 = arith.constant 0 : i32
    %c0_i32_1 = arith.constant 0 : i32
    return %c0_i32, %c0_i32_0 : i32, i32
  }
  func.func @transform_2(%arg0: i32) -> (i32, i32) {
    %c0_i32 = arith.constant 0 : i32
    %c0_i32_0 = arith.constant 0 : i32
    %c0_i32_1 = arith.constant 0 : i32
    return %c0_i32, %c0_i32_0 : i32, i32
  }
  func.func @transform_3(%arg0: i32) -> (i32, i32) {
    %c0_i32 = arith.constant 0 : i32
    %c0_i32_0 = arith.constant 0 : i32
    %c0_i32_1 = arith.constant 0 : i32
    return %c0_i32, %c0_i32_0 : i32, i32
  }
  func.func @transform_4(%arg0: i32) -> (i32, i32) {
    %c0_i32 = arith.constant 0 : i32
    %c0_i32_0 = arith.constant 0 : i32
    return %arg0, %c0_i32 : i32, i32
  }
  func.func @transform_5(%arg0: i32) -> (i32, i32) {
    %c0_i32 = arith.constant 0 : i32
    %c0_i32_0 = arith.constant 0 : i32
    return %arg0, %c0_i32 : i32, i32
  }
}

</mosaic_0001>

<llo_original>
// kernel: tpu_custom_call.1
$region0: #{tpu_custom_call.1}
  #allocation0 [shape = 'u32[]', space=smem, size = 0x4, offset = 0x4, fixed_abs, tag = 'smem constant byte address 0x4 - core index']
  #allocation1 [shape = 'u32[72,128]{1,0:T(1,128)}', space=vmem, size = 0x9000, scoped, tag = 'internal scratch']
  %s0 = inlined_call_operand.vmem [shape: f32[256,32], index: 0, kind: input, shape index: {}]
  %s1 = inlined_call_operand.vmem [shape: f32[32,128], index: 1, kind: input, shape index: {}]
  %s2 = inlined_call_operand.vmem [shape: f32[1,128], index: 2, kind: input, shape index: {}]
  %s3 = inlined_call_operand.vmem [shape: f32[128,128], index: 3, kind: input, shape index: {}]
  %s4 = inlined_call_operand.hbm [shape: f32[256,128], index: 4, kind: output, shape index: {0}]
  %s5 = inlined_call_operand.hbm [shape: f32[256,128], index: 5, kind: output, shape index: {1}]
  %6 = xla_tuple %s4, %s5
  %s7 = sld [smem:[#allocation0]]
  $region57: #{tpu_custom_call.1} parent=0
    _
  %s9 = ssub.s32 1, %s7
  %s10 = scalar_select 0, %s9, %s7
  $region1: #{tpu_custom_call.1} parent=0
    #allocation2 [shape = 'u8[131072]{0}', space=vmem, size = 0x20000, scoped, tag = 'output window, operand 0']
    #allocation3 [shape = 's32[2]{0}', space=sflag, size = 0x8, scoped, tag = 'scoped memory for tpu_custom_call.1']
    #allocation4 [shape = 'u8[131072]{0}', space=vmem, size = 0x20000, scoped, tag = 'output window, operand 1']
    #allocation5 [shape = 's32[2]{0}', space=sflag, size = 0x8, scoped, tag = 'scoped memory for tpu_custom_call.1']
    %11 = vsyncpa [#allocation3], 0
    %s12 = scalar_lea.sflag [#allocation3], 1
    %13 = vsyncpa %s12, 0
    %14 = vsyncpa [#allocation5], 0
    %s15 = scalar_lea.sflag [#allocation5], 1
    %16 = vsyncpa %s15, 0
    loop: start=0, step=1, limit=4
    $region2: #{tpu_custom_call.1} parent=1 // loop_pre_header
      _
    $region3: #{tpu_custom_call.1} parent=1 // loop_header
      %s18 = sphi 0, %s22
      %p19 = scmp.ge.s32.totalorder %s18, 4
      %s28 = sphi 0, %s30
      %s31 = sphi 0, %s28
      %s32 = sphi 0, %s31
      %s48 = sphi 0, %s32
      %s52 = sphi 0, %s52
      %s54 = sphi 0, %s52
      %s55 = sphi 0, %s54
      %s69 = sphi 0, %s55
      %s73 = sphi 0, %s73
      %s75 = sphi 0, %s73
      %s76 = sphi 0, %s75
      %s90 = sphi 0, %s76
      %s94 = sphi 0, %s94
      %s96 = sphi 0, %s94
      %s97 = sphi 0, %s96
      %s111 = sphi 0, %s97
      %s117 = sphi 0, %s119
      %s120 = sphi 0, %s117
      %s121 = sphi 0, %s120
      %s137 = sphi 0, %s121
      %s143 = sphi 0, %s145
      %s146 = sphi 0, %s143
      %s147 = sphi 0, %s146
      %s163 = sphi 0, %s147
    $region4: #{tpu_custom_call.1} parent=1 // loop_header_branch
      %21 = sbr.rel (%p19) target = $region8
    $region5: #{tpu_custom_call.1} parent=1 // loop_body
      %s23 = ssub.s32 %s18, 1
      %s24 = ssub.s32 %s18, 2
      %s25 = sadd.s32 %s18, 1
      %s26 = ssub.s32 %s18, %s25
      %p27 = scmp.eq.s32.totalorder %s26, 0
      %s29 = sadd.s32 %s28, 1
      %s30 = scalar_select %p27, %s28, %s29
      %p33 = pneg %p27
      %p34 = scmp.eq.s32.totalorder %s18, 1
      %p35 = por %p33, %p34
      %p36 = scmp.ne.s32.totalorder %s28, %s31
      %p37 = scmp.eq.s32.totalorder %s18, 0
      %p38 = por %p36, %p37
      %p39 = scmp.ne.s32.totalorder %s28, %s31
      %p40 = scmp.eq.s32.totalorder %s23, 1
      %p41 = por %p39, %p40
      %p42 = scmp.ne.s32.totalorder %s31, %s32
      %p43 = scmp.eq.s32.totalorder %s23, 0
      %p44 = por %p42, %p43
      %p45 = scmp.ne.s32.totalorder %s31, %s32
      %p46 = scmp.eq.s32.totalorder %s24, 1
      %p47 = por %p45, %p46
      %p49 = scmp.ne.s32.totalorder %s32, %s48
      %p50 = scmp.eq.s32.totalorder %s24, 0
      %p51 = por %p49, %p50
      %s53 = sadd.s32 %s52, 1
      %p56 = scmp.eq.s32.totalorder %s18, 1
      %p57 = scmp.ne.s32.totalorder %s52, %s54
      %p58 = scmp.eq.s32.totalorder %s18, 0
      %p59 = por %p57, %p58
      %p60 = scmp.ne.s32.totalorder %s52, %s54
      %p61 = scmp.eq.s32.totalorder %s23, 1
      %p62 = por %p60, %p61
      %p63 = scmp.ne.s32.totalorder %s54, %s55
      %p64 = scmp.eq.s32.totalorder %s23, 0
      %p65 = por %p63, %p64
      %p66 = scmp.ne.s32.totalorder %s54, %s55
      %p67 = scmp.eq.s32.totalorder %s24, 1
      %p68 = por %p66, %p67
      %p70 = scmp.ne.s32.totalorder %s55, %s69
      %p71 = scmp.eq.s32.totalorder %s24, 0
      %p72 = por %p70, %p71
      %s74 = sadd.s32 %s73, 1
      %p77 = scmp.eq.s32.totalorder %s18, 1
      %p78 = scmp.ne.s32.totalorder %s73, %s75
      %p79 = scmp.eq.s32.totalorder %s18, 0
      %p80 = por %p78, %p79
      %p81 = scmp.ne.s32.totalorder %s73, %s75
      %p82 = scmp.eq.s32.totalorder %s23, 1
      %p83 = por %p81, %p82
      %p84 = scmp.ne.s32.totalorder %s75, %s76
      %p85 = scmp.eq.s32.totalorder %s23, 0
      %p86 = por %p84, %p85
      %p87 = scmp.ne.s32.totalorder %s75, %s76
      %p88 = scmp.eq.s32.totalorder %s24, 1
      %p89 = por %p87, %p88
      %p91 = scmp.ne.s32.totalorder %s76, %s90
      %p92 = scmp.eq.s32.totalorder %s24, 0
      %p93 = por %p91, %p92
      %s95 = sadd.s32 %s94, 1
      %p98 = scmp.eq.s32.totalorder %s18, 1
      %p99 = scmp.ne.s32.totalorder %s94, %s96
      %p100 = scmp.eq.s32.totalorder %s18, 0
      %p101 = por %p99, %p100
      %p102 = scmp.ne.s32.totalorder %s94, %s96
      %p103 = scmp.eq.s32.totalorder %s23, 1
      %p104 = por %p102, %p103
      %p105 = scmp.ne.s32.totalorder %s96, %s97
      %p106 = scmp.eq.s32.totalorder %s23, 0
      %p107 = por %p105, %p106
      %p108 = scmp.ne.s32.totalorder %s96, %s97
      %p109 = scmp.eq.s32.totalorder %s24, 1
      %p110 = por %p108, %p109
      %p112 = scmp.ne.s32.totalorder %s97, %s111
      %p113 = scmp.eq.s32.totalorder %s24, 0
      %p114 = por %p112, %p113
      %s115 = ssub.s32 %s18, %s25
      %p116 = scmp.eq.s32.totalorder %s115, 0
      %s118 = sadd.s32 %s117, 1
      %s119 = scalar_select %p116, %s117, %s118
      %p122 = pneg %p116
      %p123 = scmp.eq.s32.totalorder %s18, 1
      %p124 = por %p122, %p123
      %p125 = scmp.ne.s32.totalorder %s117, %s120
      %p126 = scmp.eq.s32.totalorder %s18, 0
      %p127 = por %p125, %p126
      %p128 = scmp.ne.s32.totalorder %s117, %s120
      %p129 = scmp.eq.s32.totalorder %s23, 1
      %p130 = por %p128, %p129
      %p131 = scmp.ne.s32.totalorder %s120, %s121
      %p132 = scmp.eq.s32.totalorder %s23, 0
      %p133 = por %p131, %p132
      %p134 = scmp.ne.s32.totalorder %s120, %s121
      %p135 = scmp.eq.s32.totalorder %s24, 1
      %p136 = por %p134, %p135
      %p138 = scmp.ne.s32.totalorder %s121, %s137
      %p139 = scmp.eq.s32.totalorder %s24, 0
      %p140 = por %p138, %p139
      %s141 = ssub.s32 %s18, %s25
      %p142 = scmp.eq.s32.totalorder %s141, 0
      %s144 = sadd.s32 %s143, 1
      %s145 = scalar_select %p142, %s143, %s144
      %p148 = pneg %p142
      %p149 = scmp.eq.s32.totalorder %s18, 1
      %p150 = por %p148, %p149
      %p151 = scmp.ne.s32.totalorder %s143, %s146
      %p152 = scmp.eq.s32.totalorder %s18, 0
      %p153 = por %p151, %p152
      %p154 = scmp.ne.s32.totalorder %s143, %s146
      %p155 = scmp.eq.s32.totalorder %s23, 1
      %p156 = por %p154, %p155
      %p157 = scmp.ne.s32.totalorder %s146, %s147
      %p158 = scmp.eq.s32.totalorder %s23, 0
      %p159 = por %p157, %p158
      %p160 = scmp.ne.s32.totalorder %s146, %s147
      %p161 = scmp.eq.s32.totalorder %s24, 1
      %p162 = por %p160, %p161
      %p164 = scmp.ne.s32.totalorder %s147, %s163
      %p165 = scmp.eq.s32.totalorder %s24, 0
      %p166 = por %p164, %p165
      %p167 = scmp.le.s32.totalorder 1, %s18
      %p168 = scmp.lt.s32.totalorder %s18, 3
      %p169 = pnand %p167, %p168
      %p170 = pneg %p169
      // Predicated region
      $region9: #{tpu_custom_call.1} parent=5 // pred_check
        _
      $region10: #{tpu_custom_call.1} parent=5 // pred_check_branch
        %172 = sbr.rel (%p169) target = $region12
      $region11: #{tpu_custom_call.1} parent=5 // pred_region
        %s173 = ssub.s32 %s18, 1
        // Predicated region
        $region13: #{tpu_custom_call.1} parent=11 // pred_check
          %p174 = pneg %p65
        $region14: #{tpu_custom_call.1} parent=11 // pred_check_branch
          %176 = sbr.rel (%p174) target = $region16
        $region15: #{tpu_custom_call.1} parent=11 // pred_region
          _
        $region16: #{tpu_custom_call.1} parent=11 // pred_fallthru
          _
        // Predicated region
        $region17: #{tpu_custom_call.1} parent=11 // pred_check
          %p177 = pneg %p86
        $region18: #{tpu_custom_call.1} parent=11 // pred_check_branch
          %179 = sbr.rel (%p177) target = $region20
        $region19: #{tpu_custom_call.1} parent=11 // pred_region
          _
        $region20: #{tpu_custom_call.1} parent=11 // pred_fallthru
          _
        // Predicated region
        $region21: #{tpu_custom_call.1} parent=11 // pred_check
          %p180 = pneg %p107
        $region22: #{tpu_custom_call.1} parent=11 // pred_check_branch
          %182 = sbr.rel (%p180) target = $region24
        $region23: #{tpu_custom_call.1} parent=11 // pred_region
          _
        $region24: #{tpu_custom_call.1} parent=11 // pred_fallthru
          _
      $region12: #{tpu_custom_call.1} parent=5 // pred_fallthru
        _
      %p183 = scmp.lt.s32.totalorder %s18, 2
      // Predicated region
      $region25: #{tpu_custom_call.1} parent=5 // pred_check
        %p184 = pneg %p183
      $region26: #{tpu_custom_call.1} parent=5 // pred_check_branch
        %186 = sbr.rel (%p184) target = $region28
      $region27: #{tpu_custom_call.1} parent=5 // pred_region
        // Predicated region
        $region29: #{tpu_custom_call.1} parent=27 // pred_check
          %p187 = pneg %p38
        $region30: #{tpu_custom_call.1} parent=27 // pred_check_branch
          %189 = sbr.rel (%p187) target = $region32
        $region31: #{tpu_custom_call.1} parent=27 // pred_region
          %s190 = smul.u32 16, %s18
          %p191 = scmp.lt.s32.totalorder %s190, 31
          %s192 = scalar_select %p191, %s190, 31
          %s193 = smul.addr %s192, 8
          %s194 = scalar_lea.vmem %s0, %s193
          %s195 = smul.u32 16, %s18
        $region32: #{tpu_custom_call.1} parent=27 // pred_fallthru
          _
      $region28: #{tpu_custom_call.1} parent=5 // pred_fallthru
        _
      %p196 = scmp.le.s32.totalorder 1, %s18
      %p197 = scmp.lt.s32.totalorder %s18, 3
      %p198 = pnand %p196, %p197
      %p199 = pneg %p198
      // Predicated region
      $region33: #{tpu_custom_call.1} parent=5 // pred_check
        _
      $region34: #{tpu_custom_call.1} parent=5 // pred_check_branch
        %201 = sbr.rel (%p198) target = $region36
      $region35: #{tpu_custom_call.1} parent=5 // pred_region
        %s202 = ssub.s32 %s18, 1
        %s203 = smul.u32 16, %s23
        %p204 = scmp.lt.s32.totalorder %s203, 31
        %s205 = scalar_select %p204, %s203, 31
        %s206 = smul.addr %s205, 8
        %s207 = scalar_lea.vmem %s0, %s206
        %p208 = pneg %p44
        %p209 = pneg %p41
        %p210 = pneg %p65
        %p211 = pneg %p62
        %p212 = pneg %p86
        %p213 = pneg %p83
        %p214 = pneg %p107
        %p215 = pneg %p104
        %p216 = pneg %p133
        %p217 = pneg %p130
        %s218 = sand.u32 %s120, 1
        %s219 = scalar_lea.sflag [#allocation3], %s218
        %s220 = sand.u32 %s120, 1
        %s221 = smul.addr %s220, 128
        %s222 = scalar_lea.vmem [#allocation2], %s221
        %p223 = pneg %p159
        %p224 = pneg %p156
        %s225 = sand.u32 %s146, 1
        %s226 = scalar_lea.sflag [#allocation5], %s225
        %s227 = sand.u32 %s146, 1
        %s228 = smul.addr %s227, 128
        %s229 = scalar_lea.vmem [#allocation4], %s228
        %s230 = smul.u32 16, %s23
        %p231 = scmp.lt.s32.totalorder %s230, 31
        %s232 = scalar_select %p231, %s230, 31
        %s233 = smul.addr %s232, 8
        %s234 = scalar_lea.vmem %s0, %s233
        %s235 = smul.u32 16, %s23
        %s236 = smul.u32 16, %s23
        %s237 = smul.u32 16, %s23
        %v238 = vld [vmem:[%s234] sm:$0xff]
        %v239 = vld [vmem:[%s234 + $0x8] sm:$0xff]
        %v240 = vld [vmem:[%s234 + $0x10] sm:$0xff]
        %v241 = vld [vmem:[%s234 + $0x18] sm:$0xff]
        %v242 = vld [vmem:[%s234 + $0x20] sm:$0xff]
        %v243 = vld [vmem:[%s234 + $0x28] sm:$0xff]
        %v244 = vld [vmem:[%s234 + $0x30] sm:$0xff]
        %v245 = vld [vmem:[%s234 + $0x38] sm:$0xff]
        %v246 = vld [vmem:[%s234 + $0x40] sm:$0xff]
        %v247 = vld [vmem:[%s234 + $0x48] sm:$0xff]
        %v248 = vld [vmem:[%s234 + $0x50] sm:$0xff]
        %v249 = vld [vmem:[%s234 + $0x58] sm:$0xff]
        %v250 = vld [vmem:[%s234 + $0x60] sm:$0xff]
        %v251 = vld [vmem:[%s234 + $0x68] sm:$0xff]
        %v252 = vld [vmem:[%s234 + $0x70] sm:$0xff]
        %v253 = vld [vmem:[%s234 + $0x78] sm:$0xff]
        %v254 = vld [vmem:[%s1] sm:$0xff]
        %v255 = vld [vmem:[%s1 + $0x8] sm:$0xff]
        %v256 = vld [vmem:[%s1 + $0x10] sm:$0xff]
        %v257 = vld [vmem:[%s1 + $0x18] sm:$0xff]
        %v258 = vld [vmem:[%s2] sm:$0x1]
        %v260 = vperm.slane %v258, 0
        %vm262 = vcmask 261120
        %v264 = vsel %vm262, %v238, 0
        %v267 = vsel %vm262, %v239, 0
        %v270 = vsel %vm262, %v240, 0
        %v273 = vsel %vm262, %v241, 0
        %v276 = vsel %vm262, %v242, 0
        %v279 = vsel %vm262, %v243, 0
        %v282 = vsel %vm262, %v244, 0
        %v285 = vsel %vm262, %v245, 0
        %v288 = vsel %vm262, %v246, 0
        %v291 = vsel %vm262, %v247, 0
        %v294 = vsel %vm262, %v248, 0
        %v297 = vsel %vm262, %v249, 0
        %v300 = vsel %vm262, %v250, 0
        %v303 = vsel %vm262, %v251, 0
        %v306 = vsel %vm262, %v252, 0
        %v309 = vsel %vm262, %v253, 0
        %311 = vmatpush.msra.mxu0 0.0
        %312 = vmatpush.msra.mxu0 0.0
        %313 = vmatpush.msra.mxu0 0.0
        %314 = vmatpush.msra.mxu0 0.0
        %315 = vmatpush.msra.mxu0 0.0
        %316 = vmatpush.msra.mxu0 0.0
        %317 = vmatpush.msra.mxu0 0.0
        %318 = vmatpush.msra.mxu0 0.0
        %319 = vmatpush.msra.mxu0 0.0
        %320 = vmatpush.msra.mxu0 0.0
        %321 = vmatpush.msra.mxu0 0.0
        %322 = vmatpush.msra.mxu0 0.0
        %v323 = vand.u32 %v257, 4294901760
        %324 = vmatpush.msra.mxu0 %v323
        %v325 = vand.u32 %v256, 4294901760
        %326 = vmatpush.msra.mxu0 %v325
        %v327 = vand.u32 %v255, 4294901760
        %328 = vmatpush.msra.mxu0 %v327
        %v329 = vand.u32 %v254, 4294901760
        %330 = vmatpush.msra.mxu0 %v329
        %v331 = vand.u32 %v264, 4294901760
        %v332 = vsub.f32 %v264, %v331
        %v333 = vand.u32 %v332, 4294901760
        %v334 = vsub.f32 %v332, %v333
        %v335 = vand.u32 %v334, 4294901760
        %336 = vmatmul.f32.gmra.mxu0 %v335
        %v337 = vpop.f32.mrf.mxu0
        %v338 = vadd.f32 %v260, %v337
        %v339 = vand.u32 %v267, 4294901760
        %v340 = vsub.f32 %v267, %v339
        %v341 = vand.u32 %v340, 4294901760
        %v342 = vsub.f32 %v340, %v341
        %v343 = vand.u32 %v342, 4294901760
        %344 = vmatmul.f32.gmra.mxu0 %v343
        %v345 = vpop.f32.mrf.mxu0
        %v346 = vadd.f32 %v260, %v345
        %v347 = vand.u32 %v270, 4294901760
        %v348 = vsub.f32 %v270, %v347
        %v349 = vand.u32 %v348, 4294901760
        %v350 = vsub.f32 %v348, %v349
        %v351 = vand.u32 %v350, 4294901760
        %352 = vmatmul.f32.gmra.mxu0 %v351
        %v353 = vpop.f32.mrf.mxu0
        %v354 = vadd.f32 %v260, %v353
        %v355 = vand.u32 %v273, 4294901760
        %v356 = vsub.f32 %v273, %v355
        %v357 = vand.u32 %v356, 4294901760
        %v358 = vsub.f32 %v356, %v357
        %v359 = vand.u32 %v358, 4294901760
        %360 = vmatmul.f32.gmra.mxu0 %v359
        %v361 = vpop.f32.mrf.mxu0
        %v362 = vadd.f32 %v260, %v361
        %v363 = vand.u32 %v276, 4294901760
        %v364 = vsub.f32 %v276, %v363
        %v365 = vand.u32 %v364, 4294901760
        %v366 = vsub.f32 %v364, %v365
        %v367 = vand.u32 %v366, 4294901760
        %368 = vmatmul.f32.gmra.mxu0 %v367
        %v369 = vpop.f32.mrf.mxu0
        %v370 = vadd.f32 %v260, %v369
        %v371 = vand.u32 %v279, 4294901760
        %v372 = vsub.f32 %v279, %v371
        %v373 = vand.u32 %v372, 4294901760
        %v374 = vsub.f32 %v372, %v373
        %v375 = vand.u32 %v374, 4294901760
        %376 = vmatmul.f32.gmra.mxu0 %v375
        %v377 = vpop.f32.mrf.mxu0
        %v378 = vadd.f32 %v260, %v377
        %v379 = vand.u32 %v282, 4294901760
        %v380 = vsub.f32 %v282, %v379
        %v381 = vand.u32 %v380, 4294901760
        %v382 = vsub.f32 %v380, %v381
        %v383 = vand.u32 %v382, 4294901760
        %384 = vmatmul.f32.gmra.mxu0 %v383
        %v385 = vpop.f32.mrf.mxu0
        %v386 = vadd.f32 %v260, %v385
        %v387 = vand.u32 %v285, 4294901760
        %v388 = vsub.f32 %v285, %v387
        %v389 = vand.u32 %v388, 4294901760
        %v390 = vsub.f32 %v388, %v389
        %v391 = vand.u32 %v390, 4294901760
        %392 = vmatmul.f32.gmra.mxu0 %v391
        %v393 = vpop.f32.mrf.mxu0
        %v394 = vadd.f32 %v260, %v393
        %v395 = vand.u32 %v288, 4294901760
        %v396 = vsub.f32 %v288, %v395
        %v397 = vand.u32 %v396, 4294901760
        %v398 = vsub.f32 %v396, %v397
        %v399 = vand.u32 %v398, 4294901760
        %400 = vmatmul.f32.gmra.mxu0 %v399
        %v401 = vpop.f32.mrf.mxu0
        %v402 = vadd.f32 %v260, %v401
        %v403 = vand.u32 %v291, 4294901760
        %v404 = vsub.f32 %v291, %v403
        %v405 = vand.u32 %v404, 4294901760
        %v406 = vsub.f32 %v404, %v405
        %v407 = vand.u32 %v406, 4294901760
        %408 = vmatmul.f32.gmra.mxu0 %v407
        %v409 = vpop.f32.mrf.mxu0
        %v410 = vadd.f32 %v260, %v409
        %v411 = vand.u32 %v294, 4294901760
        %v412 = vsub.f32 %v294, %v411
        %v413 = vand.u32 %v412, 4294901760
        %v414 = vsub.f32 %v412, %v413
        %v415 = vand.u32 %v414, 4294901760
        %416 = vmatmul.f32.gmra.mxu0 %v415
        %v417 = vpop.f32.mrf.mxu0
        %v418 = vadd.f32 %v260, %v417
        %v419 = vand.u32 %v297, 4294901760
        %v420 = vsub.f32 %v297, %v419
        %v421 = vand.u32 %v420, 4294901760
        %v422 = vsub.f32 %v420, %v421
        %v423 = vand.u32 %v422, 4294901760
        %424 = vmatmul.f32.gmra.mxu0 %v423
        %v425 = vpop.f32.mrf.mxu0
        %v426 = vadd.f32 %v260, %v425
        %v427 = vand.u32 %v300, 4294901760
        %v428 = vsub.f32 %v300, %v427
        %v429 = vand.u32 %v428, 4294901760
        %v430 = vsub.f32 %v428, %v429
        %v431 = vand.u32 %v430, 4294901760
        %432 = vmatmul.f32.gmra.mxu0 %v431
        %v433 = vpop.f32.mrf.mxu0
        %v434 = vadd.f32 %v260, %v433
        %v435 = vand.u32 %v303, 4294901760
        %v436 = vsub.f32 %v303, %v435
        %v437 = vand.u32 %v436, 4294901760
        %v438 = vsub.f32 %v436, %v437
        %v439 = vand.u32 %v438, 4294901760
        %440 = vmatmul.f32.gmra.mxu0 %v439
        %v441 = vpop.f32.mrf.mxu0
        %v442 = vadd.f32 %v260, %v441
        %v443 = vand.u32 %v306, 4294901760
        %v444 = vsub.f32 %v306, %v443
        %v445 = vand.u32 %v444, 4294901760
        %v446 = vsub.f32 %v444, %v445
        %v447 = vand.u32 %v446, 4294901760
        %448 = vmatmul.f32.gmra.mxu0 %v447
        %v449 = vpop.f32.mrf.mxu0
        %v450 = vadd.f32 %v260, %v449
        %v451 = vand.u32 %v309, 4294901760
        %v452 = vsub.f32 %v309, %v451
        %v453 = vand.u32 %v452, 4294901760
        %v454 = vsub.f32 %v452, %v453
        %v455 = vand.u32 %v454, 4294901760
        %456 = vmatmul.f32.gmra.mxu0 %v455
        %v457 = vpop.f32.mrf.mxu0
        %v458 = vadd.f32 %v260, %v457
        %459 = vdwg.mxu0
        %460 = vmatpush.msra.mxu0 0.0
        %461 = vmatpush.msra.mxu0 0.0
        %462 = vmatpush.msra.mxu0 0.0
        %463 = vmatpush.msra.mxu0 0.0
        %464 = vmatpush.msra.mxu0 0.0
        %465 = vmatpush.msra.mxu0 0.0
        %466 = vmatpush.msra.mxu0 0.0
        %467 = vmatpush.msra.mxu0 0.0
        %468 = vmatpush.msra.mxu0 0.0
        %469 = vmatpush.msra.mxu0 0.0
        %470 = vmatpush.msra.mxu0 0.0
        %471 = vmatpush.msra.mxu0 0.0
        %v472 = vand.u32 %v257, 4294901760
        %v473 = vsub.f32 %v257, %v472
        %v474 = vand.u32 %v473, 4294901760
        %v475 = vsub.f32 %v473, %v474
        %v476 = vand.u32 %v475, 4294901760
        %477 = vmatpush.msra.mxu0 %v476
        %v478 = vand.u32 %v256, 4294901760
        %v479 = vsub.f32 %v256, %v478
        %v480 = vand.u32 %v479, 4294901760
        %v481 = vsub.f32 %v479, %v480
        %v482 = vand.u32 %v481, 4294901760
        %483 = vmatpush.msra.mxu0 %v482
        %v484 = vand.u32 %v255, 4294901760
        %v485 = vsub.f32 %v255, %v484
        %v486 = vand.u32 %v485, 4294901760
        %v487 = vsub.f32 %v485, %v486
        %v488 = vand.u32 %v487, 4294901760
        %489 = vmatpush.msra.mxu0 %v488
        %v490 = vand.u32 %v254, 4294901760
        %v491 = vsub.f32 %v254, %v490
        %v492 = vand.u32 %v491, 4294901760
        %v493 = vsub.f32 %v491, %v492
        %v494 = vand.u32 %v493, 4294901760
        %495 = vmatpush.msra.mxu0 %v494
        %v496 = vand.u32 %v264, 4294901760
        %497 = vmatmul.f32.gmra.mxu0 %v496
        %v498 = vpop.f32.mrf.mxu0
        %v499 = vadd.f32 %v338, %v498
        %v500 = vand.u32 %v267, 4294901760
        %501 = vmatmul.f32.gmra.mxu0 %v500
        %v502 = vpop.f32.mrf.mxu0
        %v503 = vadd.f32 %v346, %v502
        %v504 = vand.u32 %v270, 4294901760
        %505 = vmatmul.f32.gmra.mxu0 %v504
        %v506 = vpop.f32.mrf.mxu0
        %v507 = vadd.f32 %v354, %v506
        %v508 = vand.u32 %v273, 4294901760
        %509 = vmatmul.f32.gmra.mxu0 %v508
        %v510 = vpop.f32.mrf.mxu0
        %v511 = vadd.f32 %v362, %v510
        %v512 = vand.u32 %v276, 4294901760
        %513 = vmatmul.f32.gmra.mxu0 %v512
        %v514 = vpop.f32.mrf.mxu0
        %v515 = vadd.f32 %v370, %v514
        %v516 = vand.u32 %v279, 4294901760
        %517 = vmatmul.f32.gmra.mxu0 %v516
        %v518 = vpop.f32.mrf.mxu0
        %v519 = vadd.f32 %v378, %v518
        %v520 = vand.u32 %v282, 4294901760
        %521 = vmatmul.f32.gmra.mxu0 %v520
        %v522 = vpop.f32.mrf.mxu0
        %v523 = vadd.f32 %v386, %v522
        %v524 = vand.u32 %v285, 4294901760
        %525 = vmatmul.f32.gmra.mxu0 %v524
        %v526 = vpop.f32.mrf.mxu0
        %v527 = vadd.f32 %v394, %v526
        %v528 = vand.u32 %v288, 4294901760
        %529 = vmatmul.f32.gmra.mxu0 %v528
        %v530 = vpop.f32.mrf.mxu0
        %v531 = vadd.f32 %v402, %v530
        %v532 = vand.u32 %v291, 4294901760
        %533 = vmatmul.f32.gmra.mxu0 %v532
        %v534 = vpop.f32.mrf.mxu0
        %v535 = vadd.f32 %v410, %v534
        %v536 = vand.u32 %v294, 4294901760
        %537 = vmatmul.f32.gmra.mxu0 %v536
        %v538 = vpop.f32.mrf.mxu0
        %v539 = vadd.f32 %v418, %v538
        %v540 = vand.u32 %v297, 4294901760
        %541 = vmatmul.f32.gmra.mxu0 %v540
        %v542 = vpop.f32.mrf.mxu0
        %v543 = vadd.f32 %v426, %v542
        %v544 = vand.u32 %v300, 4294901760
        %545 = vmatmul.f32.gmra.mxu0 %v544
        %v546 = vpop.f32.mrf.mxu0
        %v547 = vadd.f32 %v434, %v546
        %v548 = vand.u32 %v303, 4294901760
        %549 = vmatmul.f32.gmra.mxu0 %v548
        %v550 = vpop.f32.mrf.mxu0
        %v551 = vadd.f32 %v442, %v550
        %v552 = vand.u32 %v306, 4294901760
        %553 = vmatmul.f32.gmra.mxu0 %v552
        %v554 = vpop.f32.mrf.mxu0
        %v555 = vadd.f32 %v450, %v554
        %v556 = vand.u32 %v309, 4294901760
        %557 = vmatmul.f32.gmra.mxu0 %v556
        %v558 = vpop.f32.mrf.mxu0
        %v559 = vadd.f32 %v458, %v558
        %560 = vdwg.mxu0
        %561 = vmatpush.msra.mxu0 0.0
        %562 = vmatpush.msra.mxu0 0.0
        %563 = vmatpush.msra.mxu0 0.0
        %564 = vmatpush.msra.mxu0 0.0
        %565 = vmatpush.msra.mxu0 0.0
        %566 = vmatpush.msra.mxu0 0.0
        %567 = vmatpush.msra.mxu0 0.0
        %568 = vmatpush.msra.mxu0 0.0
        %569 = vmatpush.msra.mxu0 0.0
        %570 = vmatpush.msra.mxu0 0.0
        %571 = vmatpush.msra.mxu0 0.0
        %572 = vmatpush.msra.mxu0 0.0
        %v573 = vand.u32 %v257, 4294901760
        %v574 = vsub.f32 %v257, %v573
        %575 = vmatpush.msra.mxu0 %v574
        %v576 = vand.u32 %v256, 4294901760
        %v577 = vsub.f32 %v256, %v576
        %578 = vmatpush.msra.mxu0 %v577
        %v579 = vand.u32 %v255, 4294901760
        %v580 = vsub.f32 %v255, %v579
        %581 = vmatpush.msra.mxu0 %v580
        %v582 = vand.u32 %v254, 4294901760
        %v583 = vsub.f32 %v254, %v582
        %584 = vmatpush.msra.mxu0 %v583
        %v585 = vand.u32 %v264, 4294901760
        %v586 = vsub.f32 %v264, %v585
        %587 = vmatmul.f32.gmra.mxu0 %v586
        %v588 = vpop.f32.mrf.mxu0
        %v589 = vadd.f32 %v499, %v588
        %v590 = vand.u32 %v267, 4294901760
        %v591 = vsub.f32 %v267, %v590
        %592 = vmatmul.f32.gmra.mxu0 %v591
        %v593 = vpop.f32.mrf.mxu0
        %v594 = vadd.f32 %v503, %v593
        %v595 = vand.u32 %v270, 4294901760
        %v596 = vsub.f32 %v270, %v595
        %597 = vmatmul.f32.gmra.mxu0 %v596
        %v598 = vpop.f32.mrf.mxu0
        %v599 = vadd.f32 %v507, %v598
        %v600 = vand.u32 %v273, 4294901760
        %v601 = vsub.f32 %v273, %v600
        %602 = vmatmul.f32.gmra.mxu0 %v601
        %v603 = vpop.f32.mrf.mxu0
        %v604 = vadd.f32 %v511, %v603
        %v605 = vand.u32 %v276, 4294901760
        %v606 = vsub.f32 %v276, %v605
        %607 = vmatmul.f32.gmra.mxu0 %v606
        %v608 = vpop.f32.mrf.mxu0
        %v609 = vadd.f32 %v515, %v608
        %v610 = vand.u32 %v279, 4294901760
        %v611 = vsub.f32 %v279, %v610
        %612 = vmatmul.f32.gmra.mxu0 %v611
        %v613 = vpop.f32.mrf.mxu0
        %v614 = vadd.f32 %v519, %v613
        %v615 = vand.u32 %v282, 4294901760
        %v616 = vsub.f32 %v282, %v615
        %617 = vmatmul.f32.gmra.mxu0 %v616
        %v618 = vpop.f32.mrf.mxu0
        %v619 = vadd.f32 %v523, %v618
        %v620 = vand.u32 %v285, 4294901760
        %v621 = vsub.f32 %v285, %v620
        %622 = vmatmul.f32.gmra.mxu0 %v621
        %v623 = vpop.f32.mrf.mxu0
        %v624 = vadd.f32 %v527, %v623
        %v625 = vand.u32 %v288, 4294901760
        %v626 = vsub.f32 %v288, %v625
        %627 = vmatmul.f32.gmra.mxu0 %v626
        %v628 = vpop.f32.mrf.mxu0
        %v629 = vadd.f32 %v531, %v628
        %v630 = vand.u32 %v291, 4294901760
        %v631 = vsub.f32 %v291, %v630
        %632 = vmatmul.f32.gmra.mxu0 %v631
        %v633 = vpop.f32.mrf.mxu0
        %v634 = vadd.f32 %v535, %v633
        %v635 = vand.u32 %v294, 4294901760
        %v636 = vsub.f32 %v294, %v635
        %637 = vmatmul.f32.gmra.mxu0 %v636
        %v638 = vpop.f32.mrf.mxu0
        %v639 = vadd.f32 %v539, %v638
        %v640 = vand.u32 %v297, 4294901760
        %v641 = vsub.f32 %v297, %v640
        %642 = vmatmul.f32.gmra.mxu0 %v641
        %v643 = vpop.f32.mrf.mxu0
        %v644 = vadd.f32 %v543, %v643
        %v645 = vand.u32 %v300, 4294901760
        %v646 = vsub.f32 %v300, %v645
        %647 = vmatmul.f32.gmra.mxu0 %v646
        %v648 = vpop.f32.mrf.mxu0
        %v649 = vadd.f32 %v547, %v648
        %v650 = vand.u32 %v303, 4294901760
        %v651 = vsub.f32 %v303, %v650
        %652 = vmatmul.f32.gmra.mxu0 %v651
        %v653 = vpop.f32.mrf.mxu0
        %v654 = vadd.f32 %v551, %v653
        %v655 = vand.u32 %v306, 4294901760
        %v656 = vsub.f32 %v306, %v655
        %657 = vmatmul.f32.gmra.mxu0 %v656
        %v658 = vpop.f32.mrf.mxu0
        %v659 = vadd.f32 %v555, %v658
        %v660 = vand.u32 %v309, 4294901760
        %v661 = vsub.f32 %v309, %v660
        %662 = vmatmul.f32.gmra.mxu0 %v661
        %v663 = vpop.f32.mrf.mxu0
        %v664 = vadd.f32 %v559, %v663
        %665 = vdwg.mxu0
        %666 = vmatpush.msra.mxu0 0.0
        %667 = vmatpush.msra.mxu0 0.0
        %668 = vmatpush.msra.mxu0 0.0
        %669 = vmatpush.msra.mxu0 0.0
        %670 = vmatpush.msra.mxu0 0.0
        %671 = vmatpush.msra.mxu0 0.0
        %672 = vmatpush.msra.mxu0 0.0
        %673 = vmatpush.msra.mxu0 0.0
        %674 = vmatpush.msra.mxu0 0.0
        %675 = vmatpush.msra.mxu0 0.0
        %676 = vmatpush.msra.mxu0 0.0
        %677 = vmatpush.msra.mxu0 0.0
        %v678 = vand.u32 %v257, 4294901760
        %679 = vmatpush.msra.mxu0 %v678
        %v680 = vand.u32 %v256, 4294901760
        %681 = vmatpush.msra.mxu0 %v680
        %v682 = vand.u32 %v255, 4294901760
        %683 = vmatpush.msra.mxu0 %v682
        %v684 = vand.u32 %v254, 4294901760
        %685 = vmatpush.msra.mxu0 %v684
        %v686 = vand.u32 %v264, 4294901760
        %v687 = vsub.f32 %v264, %v686
        %v688 = vand.u32 %v687, 4294901760
        %689 = vmatmul.f32.gmra.mxu0 %v688
        %v690 = vpop.f32.mrf.mxu0
        %v691 = vadd.f32 %v589, %v690
        %v692 = vand.u32 %v267, 4294901760
        %v693 = vsub.f32 %v267, %v692
        %v694 = vand.u32 %v693, 4294901760
        %695 = vmatmul.f32.gmra.mxu0 %v694
        %v696 = vpop.f32.mrf.mxu0
        %v697 = vadd.f32 %v594, %v696
        %v698 = vand.u32 %v270, 4294901760
        %v699 = vsub.f32 %v270, %v698
        %v700 = vand.u32 %v699, 4294901760
        %701 = vmatmul.f32.gmra.mxu0 %v700
        %v702 = vpop.f32.mrf.mxu0
        %v703 = vadd.f32 %v599, %v702
        %v704 = vand.u32 %v273, 4294901760
        %v705 = vsub.f32 %v273, %v704
        %v706 = vand.u32 %v705, 4294901760
        %707 = vmatmul.f32.gmra.mxu0 %v706
        %v708 = vpop.f32.mrf.mxu0
        %v709 = vadd.f32 %v604, %v708
        %v710 = vand.u32 %v276, 4294901760
        %v711 = vsub.f32 %v276, %v710
        %v712 = vand.u32 %v711, 4294901760
        %713 = vmatmul.f32.gmra.mxu0 %v712
        %v714 = vpop.f32.mrf.mxu0
        %v715 = vadd.f32 %v609, %v714
        %v716 = vand.u32 %v279, 4294901760
        %v717 = vsub.f32 %v279, %v716
        %v718 = vand.u32 %v717, 4294901760
        %719 = vmatmul.f32.gmra.mxu0 %v718
        %v720 = vpop.f32.mrf.mxu0
        %v721 = vadd.f32 %v614, %v720
        %v722 = vand.u32 %v282, 4294901760
        %v723 = vsub.f32 %v282, %v722
        %v724 = vand.u32 %v723, 4294901760
        %725 = vmatmul.f32.gmra.mxu0 %v724
        %v726 = vpop.f32.mrf.mxu0
        %v727 = vadd.f32 %v619, %v726
        %v728 = vand.u32 %v285, 4294901760
        %v729 = vsub.f32 %v285, %v728
        %v730 = vand.u32 %v729, 4294901760
        %731 = vmatmul.f32.gmra.mxu0 %v730
        %v732 = vpop.f32.mrf.mxu0
        %v733 = vadd.f32 %v624, %v732
        %v734 = vand.u32 %v288, 4294901760
        %v735 = vsub.f32 %v288, %v734
        %v736 = vand.u32 %v735, 4294901760
        %737 = vmatmul.f32.gmra.mxu0 %v736
        %v738 = vpop.f32.mrf.mxu0
        %v739 = vadd.f32 %v629, %v738
        %v740 = vand.u32 %v291, 4294901760
        %v741 = vsub.f32 %v291, %v740
        %v742 = vand.u32 %v741, 4294901760
        %743 = vmatmul.f32.gmra.mxu0 %v742
        %v744 = vpop.f32.mrf.mxu0
        %v745 = vadd.f32 %v634, %v744
        %v746 = vand.u32 %v294, 4294901760
        %v747 = vsub.f32 %v294, %v746
        %v748 = vand.u32 %v747, 4294901760
        %749 = vmatmul.f32.gmra.mxu0 %v748
        %v750 = vpop.f32.mrf.mxu0
        %v751 = vadd.f32 %v639, %v750
        %v752 = vand.u32 %v297, 4294901760
        %v753 = vsub.f32 %v297, %v752
        %v754 = vand.u32 %v753, 4294901760
        %755 = vmatmul.f32.gmra.mxu0 %v754
        %v756 = vpop.f32.mrf.mxu0
        %v757 = vadd.f32 %v644, %v756
        %v758 = vand.u32 %v300, 4294901760
        %v759 = vsub.f32 %v300, %v758
        %v760 = vand.u32 %v759, 4294901760
        %761 = vmatmul.f32.gmra.mxu0 %v760
        %v762 = vpop.f32.mrf.mxu0
        %v763 = vadd.f32 %v649, %v762
        %v764 = vand.u32 %v303, 4294901760
        %v765 = vsub.f32 %v303, %v764
        %v766 = vand.u32 %v765, 4294901760
        %767 = vmatmul.f32.gmra.mxu0 %v766
        %v768 = vpop.f32.mrf.mxu0
        %v769 = vadd.f32 %v654, %v768
        %v770 = vand.u32 %v306, 4294901760
        %v771 = vsub.f32 %v306, %v770
        %v772 = vand.u32 %v771, 4294901760
        %773 = vmatmul.f32.gmra.mxu0 %v772
        %v774 = vpop.f32.mrf.mxu0
        %v775 = vadd.f32 %v659, %v774
        %v776 = vand.u32 %v309, 4294901760
        %v777 = vsub.f32 %v309, %v776
        %v778 = vand.u32 %v777, 4294901760
        %779 = vmatmul.f32.gmra.mxu0 %v778
        %v780 = vpop.f32.mrf.mxu0
        %v781 = vadd.f32 %v664, %v780
        %782 = vdwg.mxu0
        %783 = vmatpush.msra.mxu0 0.0
        %784 = vmatpush.msra.mxu0 0.0
        %785 = vmatpush.msra.mxu0 0.0
        %786 = vmatpush.msra.mxu0 0.0
        %787 = vmatpush.msra.mxu0 0.0
        %788 = vmatpush.msra.mxu0 0.0
        %789 = vmatpush.msra.mxu0 0.0
        %790 = vmatpush.msra.mxu0 0.0
        %791 = vmatpush.msra.mxu0 0.0
        %792 = vmatpush.msra.mxu0 0.0
        %793 = vmatpush.msra.mxu0 0.0
        %794 = vmatpush.msra.mxu0 0.0
        %v795 = vand.u32 %v257, 4294901760
        %v796 = vsub.f32 %v257, %v795
        %v797 = vand.u32 %v796, 4294901760
        %798 = vmatpush.msra.mxu0 %v797
        %v799 = vand.u32 %v256, 4294901760
        %v800 = vsub.f32 %v256, %v799
        %v801 = vand.u32 %v800, 4294901760
        %802 = vmatpush.msra.mxu0 %v801
        %v803 = vand.u32 %v255, 4294901760
        %v804 = vsub.f32 %v255, %v803
        %v805 = vand.u32 %v804, 4294901760
        %806 = vmatpush.msra.mxu0 %v805
        %v807 = vand.u32 %v254, 4294901760
        %v808 = vsub.f32 %v254, %v807
        %v809 = vand.u32 %v808, 4294901760
        %810 = vmatpush.msra.mxu0 %v809
        %v811 = vand.u32 %v264, 4294901760
        %812 = vmatmul.f32.gmra.mxu0 %v811
        %v813 = vpop.f32.mrf.mxu0
        %v814 = vadd.f32 %v691, %v813
        %v815 = vand.u32 %v267, 4294901760
        %816 = vmatmul.f32.gmra.mxu0 %v815
        %v817 = vpop.f32.mrf.mxu0
        %v818 = vadd.f32 %v697, %v817
        %v819 = vand.u32 %v270, 4294901760
        %820 = vmatmul.f32.gmra.mxu0 %v819
        %v821 = vpop.f32.mrf.mxu0
        %v822 = vadd.f32 %v703, %v821
        %v823 = vand.u32 %v273, 4294901760
        %824 = vmatmul.f32.gmra.mxu0 %v823
        %v825 = vpop.f32.mrf.mxu0
        %v826 = vadd.f32 %v709, %v825
        %v827 = vand.u32 %v276, 4294901760
        %828 = vmatmul.f32.gmra.mxu0 %v827
        %v829 = vpop.f32.mrf.mxu0
        %v830 = vadd.f32 %v715, %v829
        %v831 = vand.u32 %v279, 4294901760
        %832 = vmatmul.f32.gmra.mxu0 %v831
        %v833 = vpop.f32.mrf.mxu0
        %v834 = vadd.f32 %v721, %v833
        %v835 = vand.u32 %v282, 4294901760
        %836 = vmatmul.f32.gmra.mxu0 %v835
        %v837 = vpop.f32.mrf.mxu0
        %v838 = vadd.f32 %v727, %v837
        %v839 = vand.u32 %v285, 4294901760
        %840 = vmatmul.f32.gmra.mxu0 %v839
        %v841 = vpop.f32.mrf.mxu0
        %v842 = vadd.f32 %v733, %v841
        %v843 = vand.u32 %v288, 4294901760
        %844 = vmatmul.f32.gmra.mxu0 %v843
        %v845 = vpop.f32.mrf.mxu0
        %v846 = vadd.f32 %v739, %v845
        %v847 = vand.u32 %v291, 4294901760
        %848 = vmatmul.f32.gmra.mxu0 %v847
        %v849 = vpop.f32.mrf.mxu0
        %v850 = vadd.f32 %v745, %v849
        %v851 = vand.u32 %v294, 4294901760
        %852 = vmatmul.f32.gmra.mxu0 %v851
        %v853 = vpop.f32.mrf.mxu0
        %v854 = vadd.f32 %v751, %v853
        %v855 = vand.u32 %v297, 4294901760
        %856 = vmatmul.f32.gmra.mxu0 %v855
        %v857 = vpop.f32.mrf.mxu0
        %v858 = vadd.f32 %v757, %v857
        %v859 = vand.u32 %v300, 4294901760
        %860 = vmatmul.f32.gmra.mxu0 %v859
        %v861 = vpop.f32.mrf.mxu0
        %v862 = vadd.f32 %v763, %v861
        %v863 = vand.u32 %v303, 4294901760
        %864 = vmatmul.f32.gmra.mxu0 %v863
        %v865 = vpop.f32.mrf.mxu0
        %v866 = vadd.f32 %v769, %v865
        %v867 = vand.u32 %v306, 4294901760
        %868 = vmatmul.f32.gmra.mxu0 %v867
        %v869 = vpop.f32.mrf.mxu0
        %v870 = vadd.f32 %v775, %v869
        %v871 = vand.u32 %v309, 4294901760
        %872 = vmatmul.f32.gmra.mxu0 %v871
        %v873 = vpop.f32.mrf.mxu0
        %v874 = vadd.f32 %v781, %v873
        %875 = vdwg.mxu0
        %876 = vmatpush.msra.mxu0 0.0
        %877 = vmatpush.msra.mxu0 0.0
        %878 = vmatpush.msra.mxu0 0.0
        %879 = vmatpush.msra.mxu0 0.0
        %880 = vmatpush.msra.mxu0 0.0
        %881 = vmatpush.msra.mxu0 0.0
        %882 = vmatpush.msra.mxu0 0.0
        %883 = vmatpush.msra.mxu0 0.0
        %884 = vmatpush.msra.mxu0 0.0
        %885 = vmatpush.msra.mxu0 0.0
        %886 = vmatpush.msra.mxu0 0.0
        %887 = vmatpush.msra.mxu0 0.0
        %v888 = vand.u32 %v257, 4294901760
        %889 = vmatpush.msra.mxu0 %v888
        %v890 = vand.u32 %v256, 4294901760
        %891 = vmatpush.msra.mxu0 %v890
        %v892 = vand.u32 %v255, 4294901760
        %893 = vmatpush.msra.mxu0 %v892
        %v894 = vand.u32 %v254, 4294901760
        %895 = vmatpush.msra.mxu0 %v894
        %v896 = vand.u32 %v264, 4294901760
        %897 = vmatmul.f32.gmra.mxu0 %v896
        %v898 = vpop.f32.mrf.mxu0
        %v899 = vadd.f32 %v814, %v898
        %v900 = vand.u32 %v267, 4294901760
        %901 = vmatmul.f32.gmra.mxu0 %v900
        %v902 = vpop.f32.mrf.mxu0
        %v903 = vadd.f32 %v818, %v902
        %v904 = vand.u32 %v270, 4294901760
        %905 = vmatmul.f32.gmra.mxu0 %v904
        %v906 = vpop.f32.mrf.mxu0
        %v907 = vadd.f32 %v822, %v906
        %v908 = vand.u32 %v273, 4294901760
        %909 = vmatmul.f32.gmra.mxu0 %v908
        %v910 = vpop.f32.mrf.mxu0
        %v911 = vadd.f32 %v826, %v910
        %v912 = vand.u32 %v276, 4294901760
        %913 = vmatmul.f32.gmra.mxu0 %v912
        %v914 = vpop.f32.mrf.mxu0
        %v915 = vadd.f32 %v830, %v914
        %v916 = vand.u32 %v279, 4294901760
        %917 = vmatmul.f32.gmra.mxu0 %v916
        %v918 = vpop.f32.mrf.mxu0
        %v919 = vadd.f32 %v834, %v918
        %v920 = vand.u32 %v282, 4294901760
        %921 = vmatmul.f32.gmra.mxu0 %v920
        %v922 = vpop.f32.mrf.mxu0
        %v923 = vadd.f32 %v838, %v922
        %v924 = vand.u32 %v285, 4294901760
        %925 = vmatmul.f32.gmra.mxu0 %v924
        %v926 = vpop.f32.mrf.mxu0
        %v927 = vadd.f32 %v842, %v926
        %v928 = vand.u32 %v288, 4294901760
        %929 = vmatmul.f32.gmra.mxu0 %v928
        %v930 = vpop.f32.mrf.mxu0
        %v931 = vadd.f32 %v846, %v930
        %v932 = vand.u32 %v291, 4294901760
        %933 = vmatmul.f32.gmra.mxu0 %v932
        %v934 = vpop.f32.mrf.mxu0
        %v935 = vadd.f32 %v850, %v934
        %v936 = vand.u32 %v294, 4294901760
        %937 = vmatmul.f32.gmra.mxu0 %v936
        %v938 = vpop.f32.mrf.mxu0
        %v939 = vadd.f32 %v854, %v938
        %v940 = vand.u32 %v297, 4294901760
        %941 = vmatmul.f32.gmra.mxu0 %v940
        %v942 = vpop.f32.mrf.mxu0
        %v943 = vadd.f32 %v858, %v942
        %v944 = vand.u32 %v300, 4294901760
        %945 = vmatmul.f32.gmra.mxu0 %v944
        %v946 = vpop.f32.mrf.mxu0
        %v947 = vadd.f32 %v862, %v946
        %v948 = vand.u32 %v303, 4294901760
        %949 = vmatmul.f32.gmra.mxu0 %v948
        %v950 = vpop.f32.mrf.mxu0
        %v951 = vadd.f32 %v866, %v950
        %v952 = vand.u32 %v306, 4294901760
        %953 = vmatmul.f32.gmra.mxu0 %v952
        %v954 = vpop.f32.mrf.mxu0
        %v955 = vadd.f32 %v870, %v954
        %v956 = vand.u32 %v309, 4294901760
        %957 = vmatmul.f32.gmra.mxu0 %v956
        %v958 = vpop.f32.mrf.mxu0
        %v959 = vadd.f32 %v874, %v958
        %960 = vdwg.mxu0
        %vm961 = vcmp.gt.f32.partialorder %v899, 0.0
        %vm962 = vcmp.gt.f32.partialorder %v903, 0.0
        %vm963 = vcmp.gt.f32.partialorder %v907, 0.0
        %vm964 = vcmp.gt.f32.partialorder %v911, 0.0
        %vm965 = vcmp.gt.f32.partialorder %v915, 0.0
        %vm966 = vcmp.gt.f32.partialorder %v919, 0.0
        %vm967 = vcmp.gt.f32.partialorder %v923, 0.0
        %vm968 = vcmp.gt.f32.partialorder %v927, 0.0
        %vm969 = vcmp.gt.f32.partialorder %v931, 0.0
        %vm970 = vcmp.gt.f32.partialorder %v935, 0.0
        %vm971 = vcmp.gt.f32.partialorder %v939, 0.0
        %vm972 = vcmp.gt.f32.partialorder %v943, 0.0
        %vm973 = vcmp.gt.f32.partialorder %v947, 0.0
        %vm974 = vcmp.gt.f32.partialorder %v951, 0.0
        %vm975 = vcmp.gt.f32.partialorder %v955, 0.0
        %vm976 = vcmp.gt.f32.partialorder %v959, 0.0
        %v977 = vmin.f32 %v899, 0.0
        %v978 = vmin.f32 %v903, 0.0
        %v979 = vmin.f32 %v907, 0.0
        %v980 = vmin.f32 %v911, 0.0
        %v981 = vmin.f32 %v915, 0.0
        %v982 = vmin.f32 %v919, 0.0
        %v983 = vmin.f32 %v923, 0.0
        %v984 = vmin.f32 %v927, 0.0
        %v985 = vmin.f32 %v931, 0.0
        %v986 = vmin.f32 %v935, 0.0
        %v987 = vmin.f32 %v939, 0.0
        %v988 = vmin.f32 %v943, 0.0
        %v989 = vmin.f32 %v947, 0.0
        %v990 = vmin.f32 %v951, 0.0
        %v991 = vmin.f32 %v955, 0.0
        %v992 = vmin.f32 %v959, 0.0
        %v993 = vmul.f32 %v977, 1.442695
        %v994 = vpow.pop %v993
        %v995 = vmul.f32 %v978, 1.442695
        %v996 = vpow.pop %v995
        %v997 = vmul.f32 %v979, 1.442695
        %v998 = vpow.pop %v997
        %v999 = vmul.f32 %v980, 1.442695
        %v1000 = vpow.pop %v999
        %v1001 = vmul.f32 %v981, 1.442695
        %v1002 = vpow.pop %v1001
        %v1003 = vmul.f32 %v982, 1.442695
        %v1004 = vpow.pop %v1003
        %v1005 = vmul.f32 %v983, 1.442695
        %v1006 = vpow.pop %v1005
        %v1007 = vmul.f32 %v984, 1.442695
        %v1008 = vpow.pop %v1007
        %v1009 = vmul.f32 %v985, 1.442695
        %v1010 = vpow.pop %v1009
        %v1011 = vmul.f32 %v986, 1.442695
        %v1012 = vpow.pop %v1011
        %v1013 = vmul.f32 %v987, 1.442695
        %v1014 = vpow.pop %v1013
        %v1015 = vmul.f32 %v988, 1.442695
        %v1016 = vpow.pop %v1015
        %v1017 = vmul.f32 %v989, 1.442695
        %v1018 = vpow.pop %v1017
        %v1019 = vmul.f32 %v990, 1.442695
        %v1020 = vpow.pop %v1019
        %v1021 = vmul.f32 %v991, 1.442695
        %v1022 = vpow.pop %v1021
        %v1023 = vmul.f32 %v992, 1.442695
        %v1024 = vpow.pop %v1023
        %v1025 = vsub.f32 %v994, 1.0
        %v1026 = vsub.f32 %v996, 1.0
        %v1027 = vsub.f32 %v998, 1.0
        %v1028 = vsub.f32 %v1000, 1.0
        %v1029 = vsub.f32 %v1002, 1.0
        %v1030 = vsub.f32 %v1004, 1.0
        %v1031 = vsub.f32 %v1006, 1.0
        %v1032 = vsub.f32 %v1008, 1.0
        %v1033 = vsub.f32 %v1010, 1.0
        %v1034 = vsub.f32 %v1012, 1.0
        %v1035 = vsub.f32 %v1014, 1.0
        %v1036 = vsub.f32 %v1016, 1.0
        %v1037 = vsub.f32 %v1018, 1.0
        %v1038 = vsub.f32 %v1020, 1.0
        %v1039 = vsub.f32 %v1022, 1.0
        %v1040 = vsub.f32 %v1024, 1.0
        %v1041 = vsel %vm961, %v899, %v1025
        %v1042 = vsel %vm962, %v903, %v1026
        %v1043 = vsel %vm963, %v907, %v1027
        %v1044 = vsel %vm964, %v911, %v1028
        %v1045 = vsel %vm965, %v915, %v1029
        %v1046 = vsel %vm966, %v919, %v1030
        %v1047 = vsel %vm967, %v923, %v1031
        %v1048 = vsel %vm968, %v927, %v1032
        %v1049 = vsel %vm969, %v931, %v1033
        %v1050 = vsel %vm970, %v935, %v1034
        %v1051 = vsel %vm971, %v939, %v1035
        %v1052 = vsel %vm972, %v943, %v1036
        %v1053 = vsel %vm973, %v947, %v1037
        %v1054 = vsel %vm974, %v951, %v1038
        %v1055 = vsel %vm975, %v955, %v1039
        %v1056 = vsel %vm976, %v959, %v1040
        %1057 = vst [vmem:[%s222] sm:$0xff] %v1041
        %1058 = vst [vmem:[%s222 + $0x8] sm:$0xff] %v1042
        %1059 = vst [vmem:[%s222 + $0x10] sm:$0xff] %v1043
        %1060 = vst [vmem:[%s222 + $0x18] sm:$0xff] %v1044
        %1061 = vst [vmem:[%s222 + $0x20] sm:$0xff] %v1045
        %1062 = vst [vmem:[%s222 + $0x28] sm:$0xff] %v1046
        %1063 = vst [vmem:[%s222 + $0x30] sm:$0xff] %v1047
        %1064 = vst [vmem:[%s222 + $0x38] sm:$0xff] %v1048
        %1065 = vst [vmem:[%s222 + $0x40] sm:$0xff] %v1049
        %1066 = vst [vmem:[%s222 + $0x48] sm:$0xff] %v1050
        %1067 = vst [vmem:[%s222 + $0x50] sm:$0xff] %v1051
        %1068 = vst [vmem:[%s222 + $0x58] sm:$0xff] %v1052
        %1069 = vst [vmem:[%s222 + $0x60] sm:$0xff] %v1053
        %1070 = vst [vmem:[%s222 + $0x68] sm:$0xff] %v1054
        %1071 = vst [vmem:[%s222 + $0x70] sm:$0xff] %v1055
        %1072 = vst [vmem:[%s222 + $0x78] sm:$0xff] %v1056
        %v1073 = vld [vmem:[%s3] sm:$0xff]
        %v1074 = vld [vmem:[%s3 + $0x8] sm:$0xff]
        %v1075 = vld [vmem:[%s3 + $0x10] sm:$0xff]
        %v1076 = vld [vmem:[%s3 + $0x18] sm:$0xff]
        %v1077 = vld [vmem:[%s3 + $0x20] sm:$0xff]
        %v1078 = vld [vmem:[%s3 + $0x28] sm:$0xff]
        %v1079 = vld [vmem:[%s3 + $0x30] sm:$0xff]
        %v1080 = vld [vmem:[%s3 + $0x38] sm:$0xff]
        %v1081 = vld [vmem:[%s3 + $0x40] sm:$0xff]
        %v1082 = vld [vmem:[%s3 + $0x48] sm:$0xff]
        %v1083 = vld [vmem:[%s3 + $0x50] sm:$0xff]
        %v1084 = vld [vmem:[%s3 + $0x58] sm:$0xff]
        %v1085 = vld [vmem:[%s3 + $0x60] sm:$0xff]
        %v1086 = vld [vmem:[%s3 + $0x68] sm:$0xff]
        %v1087 = vld [vmem:[%s3 + $0x70] sm:$0xff]
        %v1088 = vld [vmem:[%s3 + $0x78] sm:$0xff]
        %v1089 = vand.u32 %v1088, 4294901760
        %1090 = vmatpush.msra.mxu0 %v1089
        %v1091 = vand.u32 %v1087, 4294901760
        %1092 = vmatpush.msra.mxu0 %v1091
        %v1093 = vand.u32 %v1086, 4294901760
        %1094 = vmatpush.msra.mxu0 %v1093
        %v1095 = vand.u32 %v1085, 4294901760
        %1096 = vmatpush.msra.mxu0 %v1095
        %v1097 = vand.u32 %v1084, 4294901760
        %1098 = vmatpush.msra.mxu0 %v1097
        %v1099 = vand.u32 %v1083, 4294901760
        %1100 = vmatpush.msra.mxu0 %v1099
        %v1101 = vand.u32 %v1082, 4294901760
        %1102 = vmatpush.msra.mxu0 %v1101
        %v1103 = vand.u32 %v1081, 4294901760
        %1104 = vmatpush.msra.mxu0 %v1103
        %v1105 = vand.u32 %v1080, 4294901760
        %1106 = vmatpush.msra.mxu0 %v1105
        %v1107 = vand.u32 %v1079, 4294901760
        %1108 = vmatpush.msra.mxu0 %v1107
        %v1109 = vand.u32 %v1078, 4294901760
        %1110 = vmatpush.msra.mxu0 %v1109
        %v1111 = vand.u32 %v1077, 4294901760
        %1112 = vmatpush.msra.mxu0 %v1111
        %v1113 = vand.u32 %v1076, 4294901760
        %1114 = vmatpush.msra.mxu0 %v1113
        %v1115 = vand.u32 %v1075, 4294901760
        %1116 = vmatpush.msra.mxu0 %v1115
        %v1117 = vand.u32 %v1074, 4294901760
        %1118 = vmatpush.msra.mxu0 %v1117
        %v1119 = vand.u32 %v1073, 4294901760
        %1120 = vmatpush.msra.mxu0 %v1119
        %v1121 = vand.u32 %v1041, 4294901760
        %v1122 = vsub.f32 %v1041, %v1121
        %v1123 = vand.u32 %v1122, 4294901760
        %v1124 = vsub.f32 %v1122, %v1123
        %v1125 = vand.u32 %v1124, 4294901760
        %1126 = vmatmul.f32.gmra.mxu0 %v1125
        %v1127 = vpop.f32.mrf.mxu0
        %v1128 = vadd.f32 0.0, %v1127
        %v1129 = vand.u32 %v1042, 4294901760
        %v1130 = vsub.f32 %v1042, %v1129
        %v1131 = vand.u32 %v1130, 4294901760
        %v1132 = vsub.f32 %v1130, %v1131
        %v1133 = vand.u32 %v1132, 4294901760
        %1134 = vmatmul.f32.gmra.mxu0 %v1133
        %v1135 = vpop.f32.mrf.mxu0
        %v1136 = vadd.f32 0.0, %v1135
        %v1137 = vand.u32 %v1043, 4294901760
        %v1138 = vsub.f32 %v1043, %v1137
        %v1139 = vand.u32 %v1138, 4294901760
        %v1140 = vsub.f32 %v1138, %v1139
        %v1141 = vand.u32 %v1140, 4294901760
        %1142 = vmatmul.f32.gmra.mxu0 %v1141
        %v1143 = vpop.f32.mrf.mxu0
        %v1144 = vadd.f32 0.0, %v1143
        %v1145 = vand.u32 %v1044, 4294901760
        %v1146 = vsub.f32 %v1044, %v1145
        %v1147 = vand.u32 %v1146, 4294901760
        %v1148 = vsub.f32 %v1146, %v1147
        %v1149 = vand.u32 %v1148, 4294901760
        %1150 = vmatmul.f32.gmra.mxu0 %v1149
        %v1151 = vpop.f32.mrf.mxu0
        %v1152 = vadd.f32 0.0, %v1151
        %v1153 = vand.u32 %v1045, 4294901760
        %v1154 = vsub.f32 %v1045, %v1153
        %v1155 = vand.u32 %v1154, 4294901760
        %v1156 = vsub.f32 %v1154, %v1155
        %v1157 = vand.u32 %v1156, 4294901760
        %1158 = vmatmul.f32.gmra.mxu0 %v1157
        %v1159 = vpop.f32.mrf.mxu0
        %v1160 = vadd.f32 0.0, %v1159
        %v1161 = vand.u32 %v1046, 4294901760
        %v1162 = vsub.f32 %v1046, %v1161
        %v1163 = vand.u32 %v1162, 4294901760
        %v1164 = vsub.f32 %v1162, %v1163
        %v1165 = vand.u32 %v1164, 4294901760
        %1166 = vmatmul.f32.gmra.mxu0 %v1165
        %v1167 = vpop.f32.mrf.mxu0
        %v1168 = vadd.f32 0.0, %v1167
        %v1169 = vand.u32 %v1047, 4294901760
        %v1170 = vsub.f32 %v1047, %v1169
        %v1171 = vand.u32 %v1170, 4294901760
        %v1172 = vsub.f32 %v1170, %v1171
        %v1173 = vand.u32 %v1172, 4294901760
        %1174 = vmatmul.f32.gmra.mxu0 %v1173
        %v1175 = vpop.f32.mrf.mxu0
        %v1176 = vadd.f32 0.0, %v1175
        %v1177 = vand.u32 %v1048, 4294901760
        %v1178 = vsub.f32 %v1048, %v1177
        %v1179 = vand.u32 %v1178, 4294901760
        %v1180 = vsub.f32 %v1178, %v1179
        %v1181 = vand.u32 %v1180, 4294901760
        %1182 = vmatmul.f32.gmra.mxu0 %v1181
        %v1183 = vpop.f32.mrf.mxu0
        %v1184 = vadd.f32 0.0, %v1183
        %v1185 = vand.u32 %v1049, 4294901760
        %v1186 = vsub.f32 %v1049, %v1185
        %v1187 = vand.u32 %v1186, 4294901760
        %v1188 = vsub.f32 %v1186, %v1187
        %v1189 = vand.u32 %v1188, 4294901760
        %1190 = vmatmul.f32.gmra.mxu0 %v1189
        %v1191 = vpop.f32.mrf.mxu0
        %v1192 = vadd.f32 0.0, %v1191
        %v1193 = vand.u32 %v1050, 4294901760
        %v1194 = vsub.f32 %v1050, %v1193
        %v1195 = vand.u32 %v1194, 4294901760
        %v1196 = vsub.f32 %v1194, %v1195
        %v1197 = vand.u32 %v1196, 4294901760
        %1198 = vmatmul.f32.gmra.mxu0 %v1197
        %v1199 = vpop.f32.mrf.mxu0
        %v1200 = vadd.f32 0.0, %v1199
        %v1201 = vand.u32 %v1051, 4294901760
        %v1202 = vsub.f32 %v1051, %v1201
        %v1203 = vand.u32 %v1202, 4294901760
        %v1204 = vsub.f32 %v1202, %v1203
        %v1205 = vand.u32 %v1204, 4294901760
        %1206 = vmatmul.f32.gmra.mxu0 %v1205
        %v1207 = vpop.f32.mrf.mxu0
        %v1208 = vadd.f32 0.0, %v1207
        %v1209 = vand.u32 %v1052, 4294901760
        %v1210 = vsub.f32 %v1052, %v1209
        %v1211 = vand.u32 %v1210, 4294901760
        %v1212 = vsub.f32 %v1210, %v1211
        %v1213 = vand.u32 %v1212, 4294901760
        %1214 = vmatmul.f32.gmra.mxu0 %v1213
        %v1215 = vpop.f32.mrf.mxu0
        %v1216 = vadd.f32 0.0, %v1215
        %v1217 = vand.u32 %v1053, 4294901760
        %v1218 = vsub.f32 %v1053, %v1217
        %v1219 = vand.u32 %v1218, 4294901760
        %v1220 = vsub.f32 %v1218, %v1219
        %v1221 = vand.u32 %v1220, 4294901760
        %1222 = vmatmul.f32.gmra.mxu0 %v1221
        %v1223 = vpop.f32.mrf.mxu0
        %v1224 = vadd.f32 0.0, %v1223
        %v1225 = vand.u32 %v1054, 4294901760
        %v1226 = vsub.f32 %v1054, %v1225
        %v1227 = vand.u32 %v1226, 4294901760
        %v1228 = vsub.f32 %v1226, %v1227
        %v1229 = vand.u32 %v1228, 4294901760
        %1230 = vmatmul.f32.gmra.mxu0 %v1229
        %v1231 = vpop.f32.mrf.mxu0
        %v1232 = vadd.f32 0.0, %v1231
        %v1233 = vand.u32 %v1055, 4294901760
        %v1234 = vsub.f32 %v1055, %v1233
        %v1235 = vand.u32 %v1234, 4294901760
        %v1236 = vsub.f32 %v1234, %v1235
        %v1237 = vand.u32 %v1236, 4294901760
        %1238 = vmatmul.f32.gmra.mxu0 %v1237
        %v1239 = vpop.f32.mrf.mxu0
        %v1240 = vadd.f32 0.0, %v1239
        %v1241 = vand.u32 %v1056, 4294901760
        %v1242 = vsub.f32 %v1056, %v1241
        %v1243 = vand.u32 %v1242, 4294901760
        %v1244 = vsub.f32 %v1242, %v1243
        %v1245 = vand.u32 %v1244, 4294901760
        %1246 = vmatmul.f32.gmra.mxu0 %v1245
        %v1247 = vpop.f32.mrf.mxu0
        %v1248 = vadd.f32 0.0, %v1247
        %1249 = vdwg.mxu0
        %v1250 = vand.u32 %v1088, 4294901760
        %v1251 = vsub.f32 %v1088, %v1250
        %v1252 = vand.u32 %v1251, 4294901760
        %v1253 = vsub.f32 %v1251, %v1252
        %v1254 = vand.u32 %v1253, 4294901760
        %1255 = vmatpush.msra.mxu0 %v1254
        %v1256 = vand.u32 %v1087, 4294901760
        %v1257 = vsub.f32 %v1087, %v1256
        %v1258 = vand.u32 %v1257, 4294901760
        %v1259 = vsub.f32 %v1257, %v1258
        %v1260 = vand.u32 %v1259, 4294901760
        %1261 = vmatpush.msra.mxu0 %v1260
        %v1262 = vand.u32 %v1086, 4294901760
        %v1263 = vsub.f32 %v1086, %v1262
        %v1264 = vand.u32 %v1263, 4294901760
        %v1265 = vsub.f32 %v1263, %v1264
        %v1266 = vand.u32 %v1265, 4294901760
        %1267 = vmatpush.msra.mxu0 %v1266
        %v1268 = vand.u32 %v1085, 4294901760
        %v1269 = vsub.f32 %v1085, %v1268
        %v1270 = vand.u32 %v1269, 4294901760
        %v1271 = vsub.f32 %v1269, %v1270
        %v1272 = vand.u32 %v1271, 4294901760
        %1273 = vmatpush.msra.mxu0 %v1272
        %v1274 = vand.u32 %v1084, 4294901760
        %v1275 = vsub.f32 %v1084, %v1274
        %v1276 = vand.u32 %v1275, 4294901760
        %v1277 = vsub.f32 %v1275, %v1276
        %v1278 = vand.u32 %v1277, 4294901760
        %1279 = vmatpush.msra.mxu0 %v1278
        %v1280 = vand.u32 %v1083, 4294901760
        %v1281 = vsub.f32 %v1083, %v1280
        %v1282 = vand.u32 %v1281, 4294901760
        %v1283 = vsub.f32 %v1281, %v1282
        %v1284 = vand.u32 %v1283, 4294901760
        %1285 = vmatpush.msra.mxu0 %v1284
        %v1286 = vand.u32 %v1082, 4294901760
        %v1287 = vsub.f32 %v1082, %v1286
        %v1288 = vand.u32 %v1287, 4294901760
        %v1289 = vsub.f32 %v1287, %v1288
        %v1290 = vand.u32 %v1289, 4294901760
        %1291 = vmatpush.msra.mxu0 %v1290
        %v1292 = vand.u32 %v1081, 4294901760
        %v1293 = vsub.f32 %v1081, %v1292
        %v1294 = vand.u32 %v1293, 4294901760
        %v1295 = vsub.f32 %v1293, %v1294
        %v1296 = vand.u32 %v1295, 4294901760
        %1297 = vmatpush.msra.mxu0 %v1296
        %v1298 = vand.u32 %v1080, 4294901760
        %v1299 = vsub.f32 %v1080, %v1298
        %v1300 = vand.u32 %v1299, 4294901760
        %v1301 = vsub.f32 %v1299, %v1300
        %v1302 = vand.u32 %v1301, 4294901760
        %1303 = vmatpush.msra.mxu0 %v1302
        %v1304 = vand.u32 %v1079, 4294901760
        %v1305 = vsub.f32 %v1079, %v1304
        %v1306 = vand.u32 %v1305, 4294901760
        %v1307 = vsub.f32 %v1305, %v1306
        %v1308 = vand.u32 %v1307, 4294901760
        %1309 = vmatpush.msra.mxu0 %v1308
        %v1310 = vand.u32 %v1078, 4294901760
        %v1311 = vsub.f32 %v1078, %v1310
        %v1312 = vand.u32 %v1311, 4294901760
        %v1313 = vsub.f32 %v1311, %v1312
        %v1314 = vand.u32 %v1313, 4294901760
        %1315 = vmatpush.msra.mxu0 %v1314
        %v1316 = vand.u32 %v1077, 4294901760
        %v1317 = vsub.f32 %v1077, %v1316
        %v1318 = vand.u32 %v1317, 4294901760
        %v1319 = vsub.f32 %v1317, %v1318
        %v1320 = vand.u32 %v1319, 4294901760
        %1321 = vmatpush.msra.mxu0 %v1320
        %v1322 = vand.u32 %v1076, 4294901760
        %v1323 = vsub.f32 %v1076, %v1322
        %v1324 = vand.u32 %v1323, 4294901760
        %v1325 = vsub.f32 %v1323, %v1324
        %v1326 = vand.u32 %v1325, 4294901760
        %1327 = vmatpush.msra.mxu0 %v1326
        %v1328 = vand.u32 %v1075, 4294901760
        %v1329 = vsub.f32 %v1075, %v1328
        %v1330 = vand.u32 %v1329, 4294901760
        %v1331 = vsub.f32 %v1329, %v1330
        %v1332 = vand.u32 %v1331, 4294901760
        %1333 = vmatpush.msra.mxu0 %v1332
        %v1334 = vand.u32 %v1074, 4294901760
        %v1335 = vsub.f32 %v1074, %v1334
        %v1336 = vand.u32 %v1335, 4294901760
        %v1337 = vsub.f32 %v1335, %v1336
        %v1338 = vand.u32 %v1337, 4294901760
        %1339 = vmatpush.msra.mxu0 %v1338
        %v1340 = vand.u32 %v1073, 4294901760
        %v1341 = vsub.f32 %v1073, %v1340
        %v1342 = vand.u32 %v1341, 4294901760
        %v1343 = vsub.f32 %v1341, %v1342
        %v1344 = vand.u32 %v1343, 4294901760
        %1345 = vmatpush.msra.mxu0 %v1344
        %v1346 = vand.u32 %v1041, 4294901760
        %1347 = vmatmul.f32.gmra.mxu0 %v1346
        %v1348 = vpop.f32.mrf.mxu0
        %v1349 = vadd.f32 %v1128, %v1348
        %v1350 = vand.u32 %v1042, 4294901760
        %1351 = vmatmul.f32.gmra.mxu0 %v1350
        %v1352 = vpop.f32.mrf.mxu0
        %v1353 = vadd.f32 %v1136, %v1352
        %v1354 = vand.u32 %v1043, 4294901760
        %1355 = vmatmul.f32.gmra.mxu0 %v1354
        %v1356 = vpop.f32.mrf.mxu0
        %v1357 = vadd.f32 %v1144, %v1356
        %v1358 = vand.u32 %v1044, 4294901760
        %1359 = vmatmul.f32.gmra.mxu0 %v1358
        %v1360 = vpop.f32.mrf.mxu0
        %v1361 = vadd.f32 %v1152, %v1360
        %v1362 = vand.u32 %v1045, 4294901760
        %1363 = vmatmul.f32.gmra.mxu0 %v1362
        %v1364 = vpop.f32.mrf.mxu0
        %v1365 = vadd.f32 %v1160, %v1364
        %v1366 = vand.u32 %v1046, 4294901760
        %1367 = vmatmul.f32.gmra.mxu0 %v1366
        %v1368 = vpop.f32.mrf.mxu0
        %v1369 = vadd.f32 %v1168, %v1368
        %v1370 = vand.u32 %v1047, 4294901760
        %1371 = vmatmul.f32.gmra.mxu0 %v1370
        %v1372 = vpop.f32.mrf.mxu0
        %v1373 = vadd.f32 %v1176, %v1372
        %v1374 = vand.u32 %v1048, 4294901760
        %1375 = vmatmul.f32.gmra.mxu0 %v1374
        %v1376 = vpop.f32.mrf.mxu0
        %v1377 = vadd.f32 %v1184, %v1376
        %v1378 = vand.u32 %v1049, 4294901760
        %1379 = vmatmul.f32.gmra.mxu0 %v1378
        %v1380 = vpop.f32.mrf.mxu0
        %v1381 = vadd.f32 %v1192, %v1380
        %v1382 = vand.u32 %v1050, 4294901760
        %1383 = vmatmul.f32.gmra.mxu0 %v1382
        %v1384 = vpop.f32.mrf.mxu0
        %v1385 = vadd.f32 %v1200, %v1384
        %v1386 = vand.u32 %v1051, 4294901760
        %1387 = vmatmul.f32.gmra.mxu0 %v1386
        %v1388 = vpop.f32.mrf.mxu0
        %v1389 = vadd.f32 %v1208, %v1388
        %v1390 = vand.u32 %v1052, 4294901760
        %1391 = vmatmul.f32.gmra.mxu0 %v1390
        %v1392 = vpop.f32.mrf.mxu0
        %v1393 = vadd.f32 %v1216, %v1392
        %v1394 = vand.u32 %v1053, 4294901760
        %1395 = vmatmul.f32.gmra.mxu0 %v1394
        %v1396 = vpop.f32.mrf.mxu0
        %v1397 = vadd.f32 %v1224, %v1396
        %v1398 = vand.u32 %v1054, 4294901760
        %1399 = vmatmul.f32.gmra.mxu0 %v1398
        %v1400 = vpop.f32.mrf.mxu0
        %v1401 = vadd.f32 %v1232, %v1400
        %v1402 = vand.u32 %v1055, 4294901760
        %1403 = vmatmul.f32.gmra.mxu0 %v1402
        %v1404 = vpop.f32.mrf.mxu0
        %v1405 = vadd.f32 %v1240, %v1404
        %v1406 = vand.u32 %v1056, 4294901760
        %1407 = vmatmul.f32.gmra.mxu0 %v1406
        %v1408 = vpop.f32.mrf.mxu0
        %v1409 = vadd.f32 %v1248, %v1408
        %1410 = vdwg.mxu0
        %v1411 = vand.u32 %v1088, 4294901760
        %v1412 = vsub.f32 %v1088, %v1411
        %1413 = vmatpush.msra.mxu0 %v1412
        %v1414 = vand.u32 %v1087, 4294901760
        %v1415 = vsub.f32 %v1087, %v1414
        %1416 = vmatpush.msra.mxu0 %v1415
        %v1417 = vand.u32 %v1086, 4294901760
        %v1418 = vsub.f32 %v1086, %v1417
        %1419 = vmatpush.msra.mxu0 %v1418
        %v1420 = vand.u32 %v1085, 4294901760
        %v1421 = vsub.f32 %v1085, %v1420
        %1422 = vmatpush.msra.mxu0 %v1421
        %v1423 = vand.u32 %v1084, 4294901760
        %v1424 = vsub.f32 %v1084, %v1423
        %1425 = vmatpush.msra.mxu0 %v1424
        %v1426 = vand.u32 %v1083, 4294901760
        %v1427 = vsub.f32 %v1083, %v1426
        %1428 = vmatpush.msra.mxu0 %v1427
        %v1429 = vand.u32 %v1082, 4294901760
        %v1430 = vsub.f32 %v1082, %v1429
        %1431 = vmatpush.msra.mxu0 %v1430
        %v1432 = vand.u32 %v1081, 4294901760
        %v1433 = vsub.f32 %v1081, %v1432
        %1434 = vmatpush.msra.mxu0 %v1433
        %v1435 = vand.u32 %v1080, 4294901760
        %v1436 = vsub.f32 %v1080, %v1435
        %1437 = vmatpush.msra.mxu0 %v1436
        %v1438 = vand.u32 %v1079, 4294901760
        %v1439 = vsub.f32 %v1079, %v1438
        %1440 = vmatpush.msra.mxu0 %v1439
        %v1441 = vand.u32 %v1078, 4294901760
        %v1442 = vsub.f32 %v1078, %v1441
        %1443 = vmatpush.msra.mxu0 %v1442
        %v1444 = vand.u32 %v1077, 4294901760
        %v1445 = vsub.f32 %v1077, %v1444
        %1446 = vmatpush.msra.mxu0 %v1445
        %v1447 = vand.u32 %v1076, 4294901760
        %v1448 = vsub.f32 %v1076, %v1447
        %1449 = vmatpush.msra.mxu0 %v1448
        %v1450 = vand.u32 %v1075, 4294901760
        %v1451 = vsub.f32 %v1075, %v1450
        %1452 = vmatpush.msra.mxu0 %v1451
        %v1453 = vand.u32 %v1074, 4294901760
        %v1454 = vsub.f32 %v1074, %v1453
        %1455 = vmatpush.msra.mxu0 %v1454
        %v1456 = vand.u32 %v1073, 4294901760
        %v1457 = vsub.f32 %v1073, %v1456
        %1458 = vmatpush.msra.mxu0 %v1457
        %v1459 = vand.u32 %v1041, 4294901760
        %v1460 = vsub.f32 %v1041, %v1459
        %1461 = vmatmul.f32.gmra.mxu0 %v1460
        %v1462 = vpop.f32.mrf.mxu0
        %v1463 = vadd.f32 %v1349, %v1462
        %v1464 = vand.u32 %v1042, 4294901760
        %v1465 = vsub.f32 %v1042, %v1464
        %1466 = vmatmul.f32.gmra.mxu0 %v1465
        %v1467 = vpop.f32.mrf.mxu0
        %v1468 = vadd.f32 %v1353, %v1467
        %v1469 = vand.u32 %v1043, 4294901760
        %v1470 = vsub.f32 %v1043, %v1469
        %1471 = vmatmul.f32.gmra.mxu0 %v1470
        %v1472 = vpop.f32.mrf.mxu0
        %v1473 = vadd.f32 %v1357, %v1472
        %v1474 = vand.u32 %v1044, 4294901760
        %v1475 = vsub.f32 %v1044, %v1474
        %1476 = vmatmul.f32.gmra.mxu0 %v1475
        %v1477 = vpop.f32.mrf.mxu0
        %v1478 = vadd.f32 %v1361, %v1477
        %v1479 = vand.u32 %v1045, 4294901760
        %v1480 = vsub.f32 %v1045, %v1479
        %1481 = vmatmul.f32.gmra.mxu0 %v1480
        %v1482 = vpop.f32.mrf.mxu0
        %v1483 = vadd.f32 %v1365, %v1482
        %v1484 = vand.u32 %v1046, 4294901760
        %v1485 = vsub.f32 %v1046, %v1484
        %1486 = vmatmul.f32.gmra.mxu0 %v1485
        %v1487 = vpop.f32.mrf.mxu0
        %v1488 = vadd.f32 %v1369, %v1487
        %v1489 = vand.u32 %v1047, 4294901760
        %v1490 = vsub.f32 %v1047, %v1489
        %1491 = vmatmul.f32.gmra.mxu0 %v1490
        %v1492 = vpop.f32.mrf.mxu0
        %v1493 = vadd.f32 %v1373, %v1492
        %v1494 = vand.u32 %v1048, 4294901760
        %v1495 = vsub.f32 %v1048, %v1494
        %1496 = vmatmul.f32.gmra.mxu0 %v1495
        %v1497 = vpop.f32.mrf.mxu0
        %v1498 = vadd.f32 %v1377, %v1497
        %v1499 = vand.u32 %v1049, 4294901760
        %v1500 = vsub.f32 %v1049, %v1499
        %1501 = vmatmul.f32.gmra.mxu0 %v1500
        %v1502 = vpop.f32.mrf.mxu0
        %v1503 = vadd.f32 %v1381, %v1502
        %v1504 = vand.u32 %v1050, 4294901760
        %v1505 = vsub.f32 %v1050, %v1504
        %1506 = vmatmul.f32.gmra.mxu0 %v1505
        %v1507 = vpop.f32.mrf.mxu0
        %v1508 = vadd.f32 %v1385, %v1507
        %v1509 = vand.u32 %v1051, 4294901760
        %v1510 = vsub.f32 %v1051, %v1509
        %1511 = vmatmul.f32.gmra.mxu0 %v1510
        %v1512 = vpop.f32.mrf.mxu0
        %v1513 = vadd.f32 %v1389, %v1512
        %v1514 = vand.u32 %v1052, 4294901760
        %v1515 = vsub.f32 %v1052, %v1514
        %1516 = vmatmul.f32.gmra.mxu0 %v1515
        %v1517 = vpop.f32.mrf.mxu0
        %v1518 = vadd.f32 %v1393, %v1517
        %v1519 = vand.u32 %v1053, 4294901760
        %v1520 = vsub.f32 %v1053, %v1519
        %1521 = vmatmul.f32.gmra.mxu0 %v1520
        %v1522 = vpop.f32.mrf.mxu0
        %v1523 = vadd.f32 %v1397, %v1522
        %v1524 = vand.u32 %v1054, 4294901760
        %v1525 = vsub.f32 %v1054, %v1524
        %1526 = vmatmul.f32.gmra.mxu0 %v1525
        %v1527 = vpop.f32.mrf.mxu0
        %v1528 = vadd.f32 %v1401, %v1527
        %v1529 = vand.u32 %v1055, 4294901760
        %v1530 = vsub.f32 %v1055, %v1529
        %1531 = vmatmul.f32.gmra.mxu0 %v1530
        %v1532 = vpop.f32.mrf.mxu0
        %v1533 = vadd.f32 %v1405, %v1532
        %v1534 = vand.u32 %v1056, 4294901760
        %v1535 = vsub.f32 %v1056, %v1534
        %1536 = vmatmul.f32.gmra.mxu0 %v1535
        %v1537 = vpop.f32.mrf.mxu0
        %v1538 = vadd.f32 %v1409, %v1537
        %1539 = vdwg.mxu0
        %v1540 = vand.u32 %v1088, 4294901760
        %1541 = vmatpush.msra.mxu0 %v1540
        %v1542 = vand.u32 %v1087, 4294901760
        %1543 = vmatpush.msra.mxu0 %v1542
        %v1544 = vand.u32 %v1086, 4294901760
        %1545 = vmatpush.msra.mxu0 %v1544
        %v1546 = vand.u32 %v1085, 4294901760
        %1547 = vmatpush.msra.mxu0 %v1546
        %v1548 = vand.u32 %v1084, 4294901760
        %1549 = vmatpush.msra.mxu0 %v1548
        %v1550 = vand.u32 %v1083, 4294901760
        %1551 = vmatpush.msra.mxu0 %v1550
        %v1552 = vand.u32 %v1082, 4294901760
        %1553 = vmatpush.msra.mxu0 %v1552
        %v1554 = vand.u32 %v1081, 4294901760
        %1555 = vmatpush.msra.mxu0 %v1554
        %v1556 = vand.u32 %v1080, 4294901760
        %1557 = vmatpush.msra.mxu0 %v1556
        %v1558 = vand.u32 %v1079, 4294901760
        %1559 = vmatpush.msra.mxu0 %v1558
        %v1560 = vand.u32 %v1078, 4294901760
        %1561 = vmatpush.msra.mxu0 %v1560
        %v1562 = vand.u32 %v1077, 4294901760
        %1563 = vmatpush.msra.mxu0 %v1562
        %v1564 = vand.u32 %v1076, 4294901760
        %1565 = vmatpush.msra.mxu0 %v1564
        %v1566 = vand.u32 %v1075, 4294901760
        %1567 = vmatpush.msra.mxu0 %v1566
        %v1568 = vand.u32 %v1074, 4294901760
        %1569 = vmatpush.msra.mxu0 %v1568
        %v1570 = vand.u32 %v1073, 4294901760
        %1571 = vmatpush.msra.mxu0 %v1570
        %v1572 = vand.u32 %v1041, 4294901760
        %v1573 = vsub.f32 %v1041, %v1572
        %v1574 = vand.u32 %v1573, 4294901760
        %1575 = vmatmul.f32.gmra.mxu0 %v1574
        %v1576 = vpop.f32.mrf.mxu0
        %v1577 = vadd.f32 %v1463, %v1576
        %v1578 = vand.u32 %v1042, 4294901760
        %v1579 = vsub.f32 %v1042, %v1578
        %v1580 = vand.u32 %v1579, 4294901760
        %1581 = vmatmul.f32.gmra.mxu0 %v1580
        %v1582 = vpop.f32.mrf.mxu0
        %v1583 = vadd.f32 %v1468, %v1582
        %v1584 = vand.u32 %v1043, 4294901760
        %v1585 = vsub.f32 %v1043, %v1584
        %v1586 = vand.u32 %v1585, 4294901760
        %1587 = vmatmul.f32.gmra.mxu0 %v1586
        %v1588 = vpop.f32.mrf.mxu0
        %v1589 = vadd.f32 %v1473, %v1588
        %v1590 = vand.u32 %v1044, 4294901760
        %v1591 = vsub.f32 %v1044, %v1590
        %v1592 = vand.u32 %v1591, 4294901760
        %1593 = vmatmul.f32.gmra.mxu0 %v1592
        %v1594 = vpop.f32.mrf.mxu0
        %v1595 = vadd.f32 %v1478, %v1594
        %v1596 = vand.u32 %v1045, 4294901760
        %v1597 = vsub.f32 %v1045, %v1596
        %v1598 = vand.u32 %v1597, 4294901760
        %1599 = vmatmul.f32.gmra.mxu0 %v1598
        %v1600 = vpop.f32.mrf.mxu0
        %v1601 = vadd.f32 %v1483, %v1600
        %v1602 = vand.u32 %v1046, 4294901760
        %v1603 = vsub.f32 %v1046, %v1602
        %v1604 = vand.u32 %v1603, 4294901760
        %1605 = vmatmul.f32.gmra.mxu0 %v1604
        %v1606 = vpop.f32.mrf.mxu0
        %v1607 = vadd.f32 %v1488, %v1606
        %v1608 = vand.u32 %v1047, 4294901760
        %v1609 = vsub.f32 %v1047, %v1608
        %v1610 = vand.u32 %v1609, 4294901760
        %1611 = vmatmul.f32.gmra.mxu0 %v1610
        %v1612 = vpop.f32.mrf.mxu0
        %v1613 = vadd.f32 %v1493, %v1612
        %v1614 = vand.u32 %v1048, 4294901760
        %v1615 = vsub.f32 %v1048, %v1614
        %v1616 = vand.u32 %v1615, 4294901760
        %1617 = vmatmul.f32.gmra.mxu0 %v1616
        %v1618 = vpop.f32.mrf.mxu0
        %v1619 = vadd.f32 %v1498, %v1618
        %v1620 = vand.u32 %v1049, 4294901760
        %v1621 = vsub.f32 %v1049, %v1620
        %v1622 = vand.u32 %v1621, 4294901760
        %1623 = vmatmul.f32.gmra.mxu0 %v1622
        %v1624 = vpop.f32.mrf.mxu0
        %v1625 = vadd.f32 %v1503, %v1624
        %v1626 = vand.u32 %v1050, 4294901760
        %v1627 = vsub.f32 %v1050, %v1626
        %v1628 = vand.u32 %v1627, 4294901760
        %1629 = vmatmul.f32.gmra.mxu0 %v1628
        %v1630 = vpop.f32.mrf.mxu0
        %v1631 = vadd.f32 %v1508, %v1630
        %v1632 = vand.u32 %v1051, 4294901760
        %v1633 = vsub.f32 %v1051, %v1632
        %v1634 = vand.u32 %v1633, 4294901760
        %1635 = vmatmul.f32.gmra.mxu0 %v1634
        %v1636 = vpop.f32.mrf.mxu0
        %v1637 = vadd.f32 %v1513, %v1636
        %v1638 = vand.u32 %v1052, 4294901760
        %v1639 = vsub.f32 %v1052, %v1638
        %v1640 = vand.u32 %v1639, 4294901760
        %1641 = vmatmul.f32.gmra.mxu0 %v1640
        %v1642 = vpop.f32.mrf.mxu0
        %v1643 = vadd.f32 %v1518, %v1642
        %v1644 = vand.u32 %v1053, 4294901760
        %v1645 = vsub.f32 %v1053, %v1644
        %v1646 = vand.u32 %v1645, 4294901760
        %1647 = vmatmul.f32.gmra.mxu0 %v1646
        %v1648 = vpop.f32.mrf.mxu0
        %v1649 = vadd.f32 %v1523, %v1648
        %v1650 = vand.u32 %v1054, 4294901760
        %v1651 = vsub.f32 %v1054, %v1650
        %v1652 = vand.u32 %v1651, 4294901760
        %1653 = vmatmul.f32.gmra.mxu0 %v1652
        %v1654 = vpop.f32.mrf.mxu0
        %v1655 = vadd.f32 %v1528, %v1654
        %v1656 = vand.u32 %v1055, 4294901760
        %v1657 = vsub.f32 %v1055, %v1656
        %v1658 = vand.u32 %v1657, 4294901760
        %1659 = vmatmul.f32.gmra.mxu0 %v1658
        %v1660 = vpop.f32.mrf.mxu0
        %v1661 = vadd.f32 %v1533, %v1660
        %v1662 = vand.u32 %v1056, 4294901760
        %v1663 = vsub.f32 %v1056, %v1662
        %v1664 = vand.u32 %v1663, 4294901760
        %1665 = vmatmul.f32.gmra.mxu0 %v1664
        %v1666 = vpop.f32.mrf.mxu0
        %v1667 = vadd.f32 %v1538, %v1666
        %1668 = vdwg.mxu0
        %v1669 = vand.u32 %v1088, 4294901760
        %v1670 = vsub.f32 %v1088, %v1669
        %v1671 = vand.u32 %v1670, 4294901760
        %1672 = vmatpush.msra.mxu0 %v1671
        %v1673 = vand.u32 %v1087, 4294901760
        %v1674 = vsub.f32 %v1087, %v1673
        %v1675 = vand.u32 %v1674, 4294901760
        %1676 = vmatpush.msra.mxu0 %v1675
        %v1677 = vand.u32 %v1086, 4294901760
        %v1678 = vsub.f32 %v1086, %v1677
        %v1679 = vand.u32 %v1678, 4294901760
        %1680 = vmatpush.msra.mxu0 %v1679
        %v1681 = vand.u32 %v1085, 4294901760
        %v1682 = vsub.f32 %v1085, %v1681
        %v1683 = vand.u32 %v1682, 4294901760
        %1684 = vmatpush.msra.mxu0 %v1683
        %v1685 = vand.u32 %v1084, 4294901760
        %v1686 = vsub.f32 %v1084, %v1685
        %v1687 = vand.u32 %v1686, 4294901760
        %1688 = vmatpush.msra.mxu0 %v1687
        %v1689 = vand.u32 %v1083, 4294901760
        %v1690 = vsub.f32 %v1083, %v1689
        %v1691 = vand.u32 %v1690, 4294901760
        %1692 = vmatpush.msra.mxu0 %v1691
        %v1693 = vand.u32 %v1082, 4294901760
        %v1694 = vsub.f32 %v1082, %v1693
        %v1695 = vand.u32 %v1694, 4294901760
        %1696 = vmatpush.msra.mxu0 %v1695
        %v1697 = vand.u32 %v1081, 4294901760
        %v1698 = vsub.f32 %v1081, %v1697
        %v1699 = vand.u32 %v1698, 4294901760
        %1700 = vmatpush.msra.mxu0 %v1699
        %v1701 = vand.u32 %v1080, 4294901760
        %v1702 = vsub.f32 %v1080, %v1701
        %v1703 = vand.u32 %v1702, 4294901760
        %1704 = vmatpush.msra.mxu0 %v1703
        %v1705 = vand.u32 %v1079, 4294901760
        %v1706 = vsub.f32 %v1079, %v1705
        %v1707 = vand.u32 %v1706, 4294901760
        %1708 = vmatpush.msra.mxu0 %v1707
        %v1709 = vand.u32 %v1078, 4294901760
        %v1710 = vsub.f32 %v1078, %v1709
        %v1711 = vand.u32 %v1710, 4294901760
        %1712 = vmatpush.msra.mxu0 %v1711
        %v1713 = vand.u32 %v1077, 4294901760
        %v1714 = vsub.f32 %v1077, %v1713
        %v1715 = vand.u32 %v1714, 4294901760
        %1716 = vmatpush.msra.mxu0 %v1715
        %v1717 = vand.u32 %v1076, 4294901760
        %v1718 = vsub.f32 %v1076, %v1717
        %v1719 = vand.u32 %v1718, 4294901760
        %1720 = vmatpush.msra.mxu0 %v1719
        %v1721 = vand.u32 %v1075, 4294901760
        %v1722 = vsub.f32 %v1075, %v1721
        %v1723 = vand.u32 %v1722, 4294901760
        %1724 = vmatpush.msra.mxu0 %v1723
        %v1725 = vand.u32 %v1074, 4294901760
        %v1726 = vsub.f32 %v1074, %v1725
        %v1727 = vand.u32 %v1726, 4294901760
        %1728 = vmatpush.msra.mxu0 %v1727
        %v1729 = vand.u32 %v1073, 4294901760
        %v1730 = vsub.f32 %v1073, %v1729
        %v1731 = vand.u32 %v1730, 4294901760
        %1732 = vmatpush.msra.mxu0 %v1731
        %v1733 = vand.u32 %v1041, 4294901760
        %1734 = vmatmul.f32.gmra.mxu0 %v1733
        %v1735 = vpop.f32.mrf.mxu0
        %v1736 = vadd.f32 %v1577, %v1735
        %v1737 = vand.u32 %v1042, 4294901760
        %1738 = vmatmul.f32.gmra.mxu0 %v1737
        %v1739 = vpop.f32.mrf.mxu0
        %v1740 = vadd.f32 %v1583, %v1739
        %v1741 = vand.u32 %v1043, 4294901760
        %1742 = vmatmul.f32.gmra.mxu0 %v1741
        %v1743 = vpop.f32.mrf.mxu0
        %v1744 = vadd.f32 %v1589, %v1743
        %v1745 = vand.u32 %v1044, 4294901760
        %1746 = vmatmul.f32.gmra.mxu0 %v1745
        %v1747 = vpop.f32.mrf.mxu0
        %v1748 = vadd.f32 %v1595, %v1747
        %v1749 = vand.u32 %v1045, 4294901760
        %1750 = vmatmul.f32.gmra.mxu0 %v1749
        %v1751 = vpop.f32.mrf.mxu0
        %v1752 = vadd.f32 %v1601, %v1751
        %v1753 = vand.u32 %v1046, 4294901760
        %1754 = vmatmul.f32.gmra.mxu0 %v1753
        %v1755 = vpop.f32.mrf.mxu0
        %v1756 = vadd.f32 %v1607, %v1755
        %v1757 = vand.u32 %v1047, 4294901760
        %1758 = vmatmul.f32.gmra.mxu0 %v1757
        %v1759 = vpop.f32.mrf.mxu0
        %v1760 = vadd.f32 %v1613, %v1759
        %v1761 = vand.u32 %v1048, 4294901760
        %1762 = vmatmul.f32.gmra.mxu0 %v1761
        %v1763 = vpop.f32.mrf.mxu0
        %v1764 = vadd.f32 %v1619, %v1763
        %v1765 = vand.u32 %v1049, 4294901760
        %1766 = vmatmul.f32.gmra.mxu0 %v1765
        %v1767 = vpop.f32.mrf.mxu0
        %v1768 = vadd.f32 %v1625, %v1767
        %v1769 = vand.u32 %v1050, 4294901760
        %1770 = vmatmul.f32.gmra.mxu0 %v1769
        %v1771 = vpop.f32.mrf.mxu0
        %v1772 = vadd.f32 %v1631, %v1771
        %v1773 = vand.u32 %v1051, 4294901760
        %1774 = vmatmul.f32.gmra.mxu0 %v1773
        %v1775 = vpop.f32.mrf.mxu0
        %v1776 = vadd.f32 %v1637, %v1775
        %v1777 = vand.u32 %v1052, 4294901760
        %1778 = vmatmul.f32.gmra.mxu0 %v1777
        %v1779 = vpop.f32.mrf.mxu0
        %v1780 = vadd.f32 %v1643, %v1779
        %v1781 = vand.u32 %v1053, 4294901760
        %1782 = vmatmul.f32.gmra.mxu0 %v1781
        %v1783 = vpop.f32.mrf.mxu0
        %v1784 = vadd.f32 %v1649, %v1783
        %v1785 = vand.u32 %v1054, 4294901760
        %1786 = vmatmul.f32.gmra.mxu0 %v1785
        %v1787 = vpop.f32.mrf.mxu0
        %v1788 = vadd.f32 %v1655, %v1787
        %v1789 = vand.u32 %v1055, 4294901760
        %1790 = vmatmul.f32.gmra.mxu0 %v1789
        %v1791 = vpop.f32.mrf.mxu0
        %v1792 = vadd.f32 %v1661, %v1791
        %v1793 = vand.u32 %v1056, 4294901760
        %1794 = vmatmul.f32.gmra.mxu0 %v1793
        %v1795 = vpop.f32.mrf.mxu0
        %v1796 = vadd.f32 %v1667, %v1795
        %1797 = vdwg.mxu0
        %v1798 = vand.u32 %v1088, 4294901760
        %1799 = vmatpush.msra.mxu0 %v1798
        %v1800 = vand.u32 %v1087, 4294901760
        %1801 = vmatpush.msra.mxu0 %v1800
        %v1802 = vand.u32 %v1086, 4294901760
        %1803 = vmatpush.msra.mxu0 %v1802
        %v1804 = vand.u32 %v1085, 4294901760
        %1805 = vmatpush.msra.mxu0 %v1804
        %v1806 = vand.u32 %v1084, 4294901760
        %1807 = vmatpush.msra.mxu0 %v1806
        %v1808 = vand.u32 %v1083, 4294901760
        %1809 = vmatpush.msra.mxu0 %v1808
        %v1810 = vand.u32 %v1082, 4294901760
        %1811 = vmatpush.msra.mxu0 %v1810
        %v1812 = vand.u32 %v1081, 4294901760
        %1813 = vmatpush.msra.mxu0 %v1812
        %v1814 = vand.u32 %v1080, 4294901760
        %1815 = vmatpush.msra.mxu0 %v1814
        %v1816 = vand.u32 %v1079, 4294901760
        %1817 = vmatpush.msra.mxu0 %v1816
        %v1818 = vand.u32 %v1078, 4294901760
        %1819 = vmatpush.msra.mxu0 %v1818
        %v1820 = vand.u32 %v1077, 4294901760
        %1821 = vmatpush.msra.mxu0 %v1820
        %v1822 = vand.u32 %v1076, 4294901760
        %1823 = vmatpush.msra.mxu0 %v1822
        %v1824 = vand.u32 %v1075, 4294901760
        %1825 = vmatpush.msra.mxu0 %v1824
        %v1826 = vand.u32 %v1074, 4294901760
        %1827 = vmatpush.msra.mxu0 %v1826
        %v1828 = vand.u32 %v1073, 4294901760
        %1829 = vmatpush.msra.mxu0 %v1828
        %v1830 = vand.u32 %v1041, 4294901760
        %1831 = vmatmul.f32.gmra.mxu0 %v1830
        %v1832 = vpop.f32.mrf.mxu0
        %v1833 = vadd.f32 %v1736, %v1832
        %v1834 = vand.u32 %v1042, 4294901760
        %1835 = vmatmul.f32.gmra.mxu0 %v1834
        %v1836 = vpop.f32.mrf.mxu0
        %v1837 = vadd.f32 %v1740, %v1836
        %v1838 = vand.u32 %v1043, 4294901760
        %1839 = vmatmul.f32.gmra.mxu0 %v1838
        %v1840 = vpop.f32.mrf.mxu0
        %v1841 = vadd.f32 %v1744, %v1840
        %v1842 = vand.u32 %v1044, 4294901760
        %1843 = vmatmul.f32.gmra.mxu0 %v1842
        %v1844 = vpop.f32.mrf.mxu0
        %v1845 = vadd.f32 %v1748, %v1844
        %v1846 = vand.u32 %v1045, 4294901760
        %1847 = vmatmul.f32.gmra.mxu0 %v1846
        %v1848 = vpop.f32.mrf.mxu0
        %v1849 = vadd.f32 %v1752, %v1848
        %v1850 = vand.u32 %v1046, 4294901760
        %1851 = vmatmul.f32.gmra.mxu0 %v1850
        %v1852 = vpop.f32.mrf.mxu0
        %v1853 = vadd.f32 %v1756, %v1852
        %v1854 = vand.u32 %v1047, 4294901760
        %1855 = vmatmul.f32.gmra.mxu0 %v1854
        %v1856 = vpop.f32.mrf.mxu0
        %v1857 = vadd.f32 %v1760, %v1856
        %v1858 = vand.u32 %v1048, 4294901760
        %1859 = vmatmul.f32.gmra.mxu0 %v1858
        %v1860 = vpop.f32.mrf.mxu0
        %v1861 = vadd.f32 %v1764, %v1860
        %v1862 = vand.u32 %v1049, 4294901760
        %1863 = vmatmul.f32.gmra.mxu0 %v1862
        %v1864 = vpop.f32.mrf.mxu0
        %v1865 = vadd.f32 %v1768, %v1864
        %v1866 = vand.u32 %v1050, 4294901760
        %1867 = vmatmul.f32.gmra.mxu0 %v1866
        %v1868 = vpop.f32.mrf.mxu0
        %v1869 = vadd.f32 %v1772, %v1868
        %v1870 = vand.u32 %v1051, 4294901760
        %1871 = vmatmul.f32.gmra.mxu0 %v1870
        %v1872 = vpop.f32.mrf.mxu0
        %v1873 = vadd.f32 %v1776, %v1872
        %v1874 = vand.u32 %v1052, 4294901760
        %1875 = vmatmul.f32.gmra.mxu0 %v1874
        %v1876 = vpop.f32.mrf.mxu0
        %v1877 = vadd.f32 %v1780, %v1876
        %v1878 = vand.u32 %v1053, 4294901760
        %1879 = vmatmul.f32.gmra.mxu0 %v1878
        %v1880 = vpop.f32.mrf.mxu0
        %v1881 = vadd.f32 %v1784, %v1880
        %v1882 = vand.u32 %v1054, 4294901760
        %1883 = vmatmul.f32.gmra.mxu0 %v1882
        %v1884 = vpop.f32.mrf.mxu0
        %v1885 = vadd.f32 %v1788, %v1884
        %v1886 = vand.u32 %v1055, 4294901760
        %1887 = vmatmul.f32.gmra.mxu0 %v1886
        %v1888 = vpop.f32.mrf.mxu0
        %v1889 = vadd.f32 %v1792, %v1888
        %v1890 = vand.u32 %v1056, 4294901760
        %1891 = vmatmul.f32.gmra.mxu0 %v1890
        %v1892 = vpop.f32.mrf.mxu0
        %v1893 = vadd.f32 %v1796, %v1892
        %1894 = vdwg.mxu0
        %1895 = vst [vmem:[%s229] sm:$0xff] %v1833
        %1896 = vst [vmem:[%s229 + $0x8] sm:$0xff] %v1837
        %1897 = vst [vmem:[%s229 + $0x10] sm:$0xff] %v1841
        %1898 = vst [vmem:[%s229 + $0x18] sm:$0xff] %v1845
        %1899 = vst [vmem:[%s229 + $0x20] sm:$0xff] %v1849
        %1900 = vst [vmem:[%s229 + $0x28] sm:$0xff] %v1853
        %1901 = vst [vmem:[%s229 + $0x30] sm:$0xff] %v1857
        %1902 = vst [vmem:[%s229 + $0x38] sm:$0xff] %v1861
        %1903 = vst [vmem:[%s229 + $0x40] sm:$0xff] %v1865
        %1904 = vst [vmem:[%s229 + $0x48] sm:$0xff] %v1869
        %1905 = vst [vmem:[%s229 + $0x50] sm:$0xff] %v1873
        %1906 = vst [vmem:[%s229 + $0x58] sm:$0xff] %v1877
        %1907 = vst [vmem:[%s229 + $0x60] sm:$0xff] %v1881
        %1908 = vst [vmem:[%s229 + $0x68] sm:$0xff] %v1885
        %1909 = vst [vmem:[%s229 + $0x70] sm:$0xff] %v1889
        %1910 = vst [vmem:[%s229 + $0x78] sm:$0xff] %v1893
        %s1911 = sand.u32 %s120, 1
        %s1912 = scalar_lea.sflag [#allocation3], %s1911
        %s1913 = sand.u32 %s120, 1
        %s1914 = smul.addr %s1913, 128
        %s1915 = scalar_lea.vmem [#allocation2], %s1914
        %s1916 = sand.u32 %s146, 1
        %s1917 = scalar_lea.sflag [#allocation5], %s1916
        %s1918 = sand.u32 %s146, 1
        %s1919 = smul.addr %s1918, 128
        %s1920 = scalar_lea.vmem [#allocation4], %s1919
        // Predicated region
        $region37: #{tpu_custom_call.1} parent=35 // pred_check
          %p1921 = pneg %p130
        $region38: #{tpu_custom_call.1} parent=35 // pred_check_branch
          %1923 = sbr.rel (%p1921) target = $region40
        $region39: #{tpu_custom_call.1} parent=35 // pred_region
          %s1924 = smul.u32 16, %s23
          %1926 = vsyncadd %s1912, 0
          %s1927 = smul.addr %s1924, 8
          %s1928 = scalar_lea.hbm %s4, %s1927
          %s1929 = sshll.u32 %s1915, 4
          %s1930 = int_to_ptr.vmem [resolvable:$true] %s1929
          %s1931 = sshll.u32 %s1928, 4
          %s1932 = int_to_ptr.hbm [resolvable:$true] %s1931
          %1937 = dma.vmem_to_hbm [thread:$0]  %s1930, 2048, %s1932, %s1912, 128, 128, 8
        $region40: #{tpu_custom_call.1} parent=35 // pred_fallthru
          _
        // Predicated region
        $region41: #{tpu_custom_call.1} parent=35 // pred_check
          %p1938 = pneg %p156
        $region42: #{tpu_custom_call.1} parent=35 // pred_check_branch
          %1940 = sbr.rel (%p1938) target = $region44
        $region43: #{tpu_custom_call.1} parent=35 // pred_region
          %s1941 = smul.u32 16, %s23
          %1943 = vsyncadd %s1917, 0
          %s1944 = smul.addr %s1941, 8
          %s1945 = scalar_lea.hbm %s5, %s1944
          %s1946 = sshll.u32 %s1920, 4
          %s1947 = int_to_ptr.vmem [resolvable:$true] %s1946
          %s1948 = sshll.u32 %s1945, 4
          %s1949 = int_to_ptr.hbm [resolvable:$true] %s1948
          %1954 = dma.vmem_to_hbm [thread:$0]  %s1947, 2048, %s1949, %s1917, 128, 128, 8
        $region44: #{tpu_custom_call.1} parent=35 // pred_fallthru
          _
      $region36: #{tpu_custom_call.1} parent=5 // pred_fallthru
        _
      %p1955 = scmp.le.s32.totalorder 2, %s18
      // Predicated region
      $region45: #{tpu_custom_call.1} parent=5 // pred_check
        %p1956 = pneg %p1955
      $region46: #{tpu_custom_call.1} parent=5 // pred_check_branch
        %1958 = sbr.rel (%p1956) target = $region48
      $region47: #{tpu_custom_call.1} parent=5 // pred_region
        %s1959 = ssub.s32 %s18, 2
        // Predicated region
        $region49: #{tpu_custom_call.1} parent=47 // pred_check
          %p1960 = pneg %p136
        $region50: #{tpu_custom_call.1} parent=47 // pred_check_branch
          %1962 = sbr.rel (%p1960) target = $region52
        $region51: #{tpu_custom_call.1} parent=47 // pred_region
          %s1963 = sand.u32 %s121, 1
          %s1964 = scalar_lea.sflag [#allocation3], %s1963
          %s1965 = sand.u32 %s121, 1
          %s1966 = smul.addr %s1965, 128
          %s1967 = scalar_lea.vmem [#allocation2], %s1966
          %1969 = dma.done %s1964, 2048
        $region52: #{tpu_custom_call.1} parent=47 // pred_fallthru
          _
        // Predicated region
        $region53: #{tpu_custom_call.1} parent=47 // pred_check
          %p1970 = pneg %p162
        $region54: #{tpu_custom_call.1} parent=47 // pred_check_branch
          %1972 = sbr.rel (%p1970) target = $region56
        $region55: #{tpu_custom_call.1} parent=47 // pred_region
          %s1973 = sand.u32 %s147, 1
          %s1974 = scalar_lea.sflag [#allocation5], %s1973
          %s1975 = sand.u32 %s147, 1
          %s1976 = smul.addr %s1975, 128
          %s1977 = scalar_lea.vmem [#allocation4], %s1976
          %1979 = dma.done %s1974, 2048
        $region56: #{tpu_custom_call.1} parent=47 // pred_fallthru
          _
      $region48: #{tpu_custom_call.1} parent=5 // pred_fallthru
        _
    $region6: #{tpu_custom_call.1} parent=1 // loop_footer
      %s22 = sadd.s32 1, %s18
    $region7: #{tpu_custom_call.1} parent=1 // loop_footer_branch
      %17 = sbr.rel target = $region3
    $region8: #{tpu_custom_call.1} parent=1 // loop_exit
      _
    %1980 = vsyncpa [#allocation3], 1
    %s1981 = scalar_lea.sflag [#allocation3], 1
    %1982 = vsyncpa %s1981, 1
    %1983 = vsyncpa [#allocation5], 1
    %s1984 = scalar_lea.sflag [#allocation5], 1
    %1985 = vsyncpa %s1984, 1

</llo_original>
